<compile_context>
chip_gen: v7x
topology: tpu7x:2x2x1
jax: 0.10.0
libtpu: 0.0.40
codegen_flags: <defaults>
</compile_context>

<pallas_src>
import functools

import jax
import jax.numpy as jnp
from jax import lax
from jax.experimental import pallas as pl
from jax.experimental.pallas import tpu as pltpu

EPS = 1e-5                     # nn.BatchNorm2d default
MXU_DTYPE = jnp.bfloat16       # MXU operand / staging dtype (f32 accumulation)
SUBLANE16 = 16                 # bf16 sublane tile height; channel pads use it


def _round_up(x, m):
    return (x + m - 1) // m * m


# ----------------------------- pass 1 kernel --------------------------------
def _conv1_stats_kernel(x_ref, w1_ref, qmask_ref,          # inputs  (per image)
                        y1_ref, s1_ref, s2_ref,            # outputs (per image)
                        im2col_ref,                        # VMEM scratch (bf16)
                        *, Wp, L, Cinp):
    """conv1 (3x3, pad 1) on one image + per-image BN partial sums (f32)."""
    shifts = [dy * Wp + dx for dy in range(3) for dx in range(3)]
    xf = x_ref[0]                                   # (Cinp, Lp_ext) bf16
    # im2col staging: each tap is a pure lane shift of the flat padded frame;
    # 16-row bf16 strips keep every store sublane-tile aligned.
    for t, s in enumerate(shifts):
        im2col_ref[t * Cinp:(t + 1) * Cinp, :] = xf[:, s:s + L]
    y1 = jnp.dot(w1_ref[...], im2col_ref[...],      # (Coutp, L), K = 9*Cinp
                 preferred_element_type=jnp.float32)
    y1 = y1 * qmask_ref[...]                        # zero wrap columns
    # BN partial sums taken from the f32 accumulator, before the bf16 store.
    s1_ref[0] = jnp.sum(y1, axis=1, keepdims=True)
    s2_ref[0] = jnp.sum(y1 * y1, axis=1, keepdims=True)
    y1_ref[0] = y1.astype(y1_ref.dtype)             # lane-dense bf16 store


# ----------------------------- pass 2 kernel --------------------------------
def _bn_conv2_kernel(y1_ref, w2_ref, qmask_ref, scale_ref, bias_ref,   # inputs
                     out_ref,                                          # output
                     im2col_ref, zp_ref,                               # scratch
                     *, Wp, L, P, Coutp):
    """Folded BN -> ReLU -> conv2 (3x3, pad 1) -> ReLU on one image."""
    shifts = [dy * Wp + dx for dy in range(3) for dx in range(3)]
    zp_len = zp_ref.shape[1]
    # Zero only the head/tail halo strips of the flat padded frame, every step
    # (cheap, and megacore-safe: no pl.when(program_id == 0) scratch init).
    zp_ref[:, 0:P] = jnp.zeros((Coutp, P), zp_ref.dtype)
    zp_ref[:, P + L:] = jnp.zeros((Coutp, zp_len - P - L), zp_ref.dtype)

    z = jnp.maximum(y1_ref[0].astype(jnp.float32) * scale_ref[...]
                    + bias_ref[...], 0.0)
    z = z * qmask_ref[...]          # wrap columns double as left/right halo
    zp_ref[:, P:P + L] = z.astype(zp_ref.dtype)     # 128-aligned interior vst

    base = P - (Wp + 1)
    zf = zp_ref[...]                                # (Coutp, zp_len) bf16
    for t, s in enumerate(shifts):
        im2col_ref[t * Coutp:(t + 1) * Coutp, :] = zf[:, base + s:base + s + L]
    y2 = jnp.dot(w2_ref[...], im2col_ref[...],      # (Coutp, L), K = 9*Coutp
                 preferred_element_type=jnp.float32)
    # Wrap columns of y2 are garbage (not NaN: zp is fully initialized); the
    # caller's reshape+slice drops them.
    out_ref[0] = jnp.maximum(y2, 0.0)


def twice_conv_nchw(x, w1, w2, gamma, beta):
    """PyTorch-convention TwiceConv forward: NCHW in/out, OIHW weights."""
    N, Cin, H, W = x.shape
    Cout = w1.shape[0]

    # bf16 staging: channel pads are multiples of the 16-row bf16 sublane tile.
    Cinp, Coutp = _round_up(Cin, SUBLANE16), _round_up(Cout, SUBLANE16)
    Hp, Wp = H + 2, W + 2
    L = H * Wp                          # flat output-frame length (lane axis)
    Lp = Hp * Wp
    Lp_ext = _round_up(Lp + 2, 128)     # room for the largest tap shift 2*Wp+2
    P = 128                             # 128-aligned interior offset in z frame
    ZP_LEN = _round_up(P + L + Wp + 2, 128)

    # ---- host-side layout plumbing (tiny, one cheap XLA pass each) ----
    xq = jnp.pad(x, ((0, 0), (0, Cinp - Cin), (1, 1), (1, 1)))     # C pad + halo
    x_flat = jnp.pad(xq.reshape(N, Cinp, Lp),
                     ((0, 0), (0, 0), (0, Lp_ext - Lp))).astype(MXU_DTYPE)

    w1p = jnp.pad(w1, ((0, Coutp - Cout), (0, Cinp - Cin), (0, 0), (0, 0)))
    w2p = jnp.pad(w2, ((0, Coutp - Cout), (0, Coutp - Cout), (0, 0), (0, 0)))
    # (Co,Ci,ky,kx) -> (Co,ky,kx,Ci) -> (Co, 9*Ci), matching im2col row order.
    w1_mat = w1p.transpose(0, 2, 3, 1).reshape(Coutp, 9 * Cinp).astype(MXU_DTYPE)
    w2_mat = w2p.transpose(0, 2, 3, 1).reshape(Coutp, 9 * Coutp).astype(MXU_DTYPE)

    qmask = (jnp.arange(L, dtype=jnp.int32) % Wp < W).astype(
        jnp.float32).reshape(1, L)

    # -------- pass 1: per-image conv1 + partial BN sums (grid over N) --------
    k1 = functools.partial(_conv1_stats_kernel, Wp=Wp, L=L, Cinp=Cinp)
    y1, s1p, s2p = pl.pallas_call(
        k1,
        out_shape=(jax.ShapeDtypeStruct((N, Coutp, L), MXU_DTYPE),
                   jax.ShapeDtypeStruct((N, Coutp, 1), jnp.float32),
                   jax.ShapeDtypeStruct((N, Coutp, 1), jnp.float32)),
        grid_spec=pltpu.PrefetchScalarGridSpec(
            num_scalar_prefetch=0,
            grid=(N,),
            in_specs=[
                pl.BlockSpec((1, Cinp, Lp_ext), lambda n: (n, 0, 0)),
                pl.BlockSpec((Coutp, 9 * Cinp), lambda n: (0, 0)),
                pl.BlockSpec((1, L), lambda n: (0, 0)),
            ],
            out_specs=(
                pl.BlockSpec((1, Coutp, L), lambda n: (n, 0, 0)),
                pl.BlockSpec((1, Coutp, 1), lambda n: (n, 0, 0)),
                pl.BlockSpec((1, Coutp, 1), lambda n: (n, 0, 0)),
            ),
            scratch_shapes=[pltpu.VMEM((9 * Cinp, L), MXU_DTYPE)]),
        compiler_params=pltpu.CompilerParams(
            dimension_semantics=("parallel",)),
    )(x_flat, w1_mat, qmask)

    # ---- fold BN on host (tiny): training-mode batch stats, biased variance ----
    inv_count = 1.0 / float(N * H * W)
    s1 = jnp.sum(s1p[:, :, 0], axis=0)              # (Coutp,) f32
    s2 = jnp.sum(s2p[:, :, 0], axis=0)
    mean = s1 * inv_count
    # TODO(synk): E[y^2]-E[y]^2 in f32 can cancel for |mean| >> std; add a
    # centered second pass over y1 if this runs on such data.
    var = s2 * inv_count - mean * mean
    gammap = jnp.pad(gamma.astype(jnp.float32), (0, Coutp - Cout),
                     constant_values=1.0)
    betap = jnp.pad(beta.astype(jnp.float32), (0, Coutp - Cout))
    scale_f = gammap * lax.rsqrt(var + EPS)
    bias_f = betap - mean * scale_f
    scale = scale_f.reshape(Coutp, 1)
    bias = bias_f.reshape(Coutp, 1)

    # -------- pass 2: per-image BN + ReLU + conv2 + ReLU (grid over N) --------
    k2 = functools.partial(_bn_conv2_kernel, Wp=Wp, L=L, P=P, Coutp=Coutp)
    out_flat = pl.pallas_call(
        k2,
        out_shape=jax.ShapeDtypeStruct((N, Coutp, L), jnp.float32),
        grid_spec=pltpu.PrefetchScalarGridSpec(
            num_scalar_prefetch=0,
            grid=(N,),
            in_specs=[
                pl.BlockSpec((1, Coutp, L), lambda n: (n, 0, 0)),
                pl.BlockSpec((Coutp, 9 * Coutp), lambda n: (0, 0)),
                pl.BlockSpec((1, L), lambda n: (0, 0)),
                pl.BlockSpec((Coutp, 1), lambda n: (0, 0)),
                pl.BlockSpec((Coutp, 1), lambda n: (0, 0)),
            ],
            out_specs=pl.BlockSpec((1, Coutp, L), lambda n: (n, 0, 0)),
            scratch_shapes=[
                pltpu.VMEM((9 * Coutp, L), MXU_DTYPE),    # im2col patches
                pltpu.VMEM((Coutp, ZP_LEN), MXU_DTYPE),   # flat padded z frame
            ]),
        compiler_params=pltpu.CompilerParams(
            dimension_semantics=("parallel",)),
    )(y1, w2_mat, qmask, scale, bias)

    # Layout plumbing back to NCHW: drop wrap columns + padded channels.
    return out_flat.reshape(N, Coutp, H, Wp)[:, :Cout, :, :W]


def reference_nchw(x, w1, w2, gamma, beta):
    dn = ('NCHW', 'OIHW', 'NCHW')
    hi = lax.Precision.HIGHEST
    y1 = lax.conv_general_dilated(x, w1, (1, 1), ((1, 1), (1, 1)),
                                  dimension_numbers=dn, precision=hi)
    mean = y1.mean(axis=(0, 2, 3), keepdims=True)
    var = y1.var(axis=(0, 2, 3), keepdims=True)   # biased, as PyTorch BN forward
    z = (y1 - mean) / jnp.sqrt(var + EPS)
    z = z * gamma.reshape(1, -1, 1, 1) + beta.reshape(1, -1, 1, 1)
    z = jnp.maximum(z, 0.0)
    y2 = lax.conv_general_dilated(z, w2, (1, 1), ((1, 1), (1, 1)),
                                  dimension_numbers=dn, precision=hi)
    return jnp.maximum(y2, 0.0)


if __name__ == "__main__":
    key = jax.random.PRNGKey(0)
    k_x, k_w1, k_w2, k_g, k_b = jax.random.split(key, 5)

    N, Cin, Cout, H, W = 2, 4, 8, 16, 16

    x = jax.random.normal(k_x, (N, Cin, H, W), jnp.float32)              # NCHW
    w1 = 0.2 * jax.random.normal(k_w1, (Cout, Cin, 3, 3), jnp.float32)   # OIHW
    w2 = 0.2 * jax.random.normal(k_w2, (Cout, Cout, 3, 3), jnp.float32)
    gamma = 1.0 + 0.1 * jax.random.normal(k_g, (Cout,), jnp.float32)     # BN weight
    beta = 0.1 * jax.random.normal(k_b, (Cout,), jnp.float32)            # BN bias

    out = jax.jit(twice_conv_nchw)(x, w1, w2, gamma, beta)
    out = jax.block_until_ready(out)

    ref = reference_nchw(x, w1, w2, gamma, beta)
    assert out.shape == ref.shape == (N, Cout, H, W)
    err = jnp.max(jnp.abs(out - ref))
    # Kernel runs the whole pipeline with bf16 MXU operands / bf16 staging and
    # f32 accumulation, while the reference is pure f32 at HIGHEST precision;
    # a few percent absolute difference is the expected bf16 error envelope.
    assert jnp.allclose(out, ref, atol=6e-2, rtol=3e-2), f"max abs diff {err}"

    print("KERNEL_OK")
</pallas_src>

<mosaic_0001>
module attributes {stable_mosaic.version = 11 : i64} {
  func.func @_conv1_stats_kernel(%arg0: i32, %arg1: memref<1x16x384xbf16, #tpu.memory_space<vmem>>, %arg2: memref<16x144xbf16, #tpu.memory_space<vmem>>, %arg3: memref<1x288xf32, #tpu.memory_space<vmem>>, %arg4: memref<1x16x288xbf16, #tpu.memory_space<vmem>>, %arg5: memref<1x16x1xf32, #tpu.memory_space<vmem>>, %arg6: memref<1x16x1xf32, #tpu.memory_space<vmem>>, %arg7: memref<144x288xbf16, #tpu.memory_space<vmem>>) attributes {dimension_semantics = [#tpu.dimension_semantics<parallel>], iteration_bounds = array<i64: 2>, scalar_prefetch = 0 : i64, scratch_operands = 1 : i64, tpu.core_type = #tpu.core_type<tc>, window_params = [{transform_indices = @transform_0, window_bounds = array<i64: 1, 16, 384>}, {pipeline_mode = #tpu.pipeline_mode<synchronous>, transform_indices = @transform_1, window_bounds = array<i64: 16, 144>}, {pipeline_mode = #tpu.pipeline_mode<synchronous>, transform_indices = @transform_2, window_bounds = array<i64: 1, 288>}, {transform_indices = @transform_3, window_bounds = array<i64: 1, 16, 288>}, {transform_indices = @transform_4, window_bounds = array<i64: 1, 16, 1>}, {transform_indices = @transform_5, window_bounds = array<i64: 1, 16, 1>}]} {
    %c0 = arith.constant 0 : index
    %c0_0 = arith.constant 0 : index
    %c0_1 = arith.constant 0 : index
    %0 = vector.load %arg1[%c0, %c0_0, %c0_1] : memref<1x16x384xbf16, #tpu.memory_space<vmem>>, vector<1x16x384xbf16>
    %1 = vector.shape_cast %0 : vector<1x16x384xbf16> to vector<16x384xbf16>
    %2 = vector.extract_strided_slice %1 {offsets = [0, 0], sizes = [16, 288], strides = [1, 1]} : vector<16x384xbf16> to vector<16x288xbf16>
    %c0_2 = arith.constant 0 : index
    %c0_3 = arith.constant 0 : index
    %3 = vector.load %arg7[%c0_2, %c0_3] : memref<144x288xbf16, #tpu.memory_space<vmem>>, vector<16x288xbf16>
    tpu.vector_store %arg7[%c0_2, %c0_3], %2 {strides = array<i32>} : memref<144x288xbf16, #tpu.memory_space<vmem>>, vector<16x288xbf16>,
    %4 = vector.extract_strided_slice %1 {offsets = [0, 1], sizes = [16, 288], strides = [1, 1]} : vector<16x384xbf16> to vector<16x288xbf16>
    %c16 = arith.constant 16 : index
    %c0_4 = arith.constant 0 : index
    %5 = vector.load %arg7[%c16, %c0_4] : memref<144x288xbf16, #tpu.memory_space<vmem>>, vector<16x288xbf16>
    tpu.vector_store %arg7[%c16, %c0_4], %4 {strides = array<i32>} : memref<144x288xbf16, #tpu.memory_space<vmem>>, vector<16x288xbf16>,
    %6 = vector.extract_strided_slice %1 {offsets = [0, 2], sizes = [16, 288], strides = [1, 1]} : vector<16x384xbf16> to vector<16x288xbf16>
    %c32 = arith.constant 32 : index
    %c0_5 = arith.constant 0 : index
    %7 = vector.load %arg7[%c32, %c0_5] : memref<144x288xbf16, #tpu.memory_space<vmem>>, vector<16x288xbf16>
    tpu.vector_store %arg7[%c32, %c0_5], %6 {strides = array<i32>} : memref<144x288xbf16, #tpu.memory_space<vmem>>, vector<16x288xbf16>,
    %8 = vector.extract_strided_slice %1 {offsets = [0, 18], sizes = [16, 288], strides = [1, 1]} : vector<16x384xbf16> to vector<16x288xbf16>
    %c48 = arith.constant 48 : index
    %c0_6 = arith.constant 0 : index
    %9 = vector.load %arg7[%c48, %c0_6] : memref<144x288xbf16, #tpu.memory_space<vmem>>, vector<16x288xbf16>
    tpu.vector_store %arg7[%c48, %c0_6], %8 {strides = array<i32>} : memref<144x288xbf16, #tpu.memory_space<vmem>>, vector<16x288xbf16>,
    %10 = vector.extract_strided_slice %1 {offsets = [0, 19], sizes = [16, 288], strides = [1, 1]} : vector<16x384xbf16> to vector<16x288xbf16>
    %c64 = arith.constant 64 : index
    %c0_7 = arith.constant 0 : index
    %11 = vector.load %arg7[%c64, %c0_7] : memref<144x288xbf16, #tpu.memory_space<vmem>>, vector<16x288xbf16>
    tpu.vector_store %arg7[%c64, %c0_7], %10 {strides = array<i32>} : memref<144x288xbf16, #tpu.memory_space<vmem>>, vector<16x288xbf16>,
    %12 = vector.extract_strided_slice %1 {offsets = [0, 20], sizes = [16, 288], strides = [1, 1]} : vector<16x384xbf16> to vector<16x288xbf16>
    %c80 = arith.constant 80 : index
    %c0_8 = arith.constant 0 : index
    %13 = vector.load %arg7[%c80, %c0_8] : memref<144x288xbf16, #tpu.memory_space<vmem>>, vector<16x288xbf16>
    tpu.vector_store %arg7[%c80, %c0_8], %12 {strides = array<i32>} : memref<144x288xbf16, #tpu.memory_space<vmem>>, vector<16x288xbf16>,
    %14 = vector.extract_strided_slice %1 {offsets = [0, 36], sizes = [16, 288], strides = [1, 1]} : vector<16x384xbf16> to vector<16x288xbf16>
    %c96 = arith.constant 96 : index
    %c0_9 = arith.constant 0 : index
    %15 = vector.load %arg7[%c96, %c0_9] : memref<144x288xbf16, #tpu.memory_space<vmem>>, vector<16x288xbf16>
    tpu.vector_store %arg7[%c96, %c0_9], %14 {strides = array<i32>} : memref<144x288xbf16, #tpu.memory_space<vmem>>, vector<16x288xbf16>,
    %16 = vector.extract_strided_slice %1 {offsets = [0, 37], sizes = [16, 288], strides = [1, 1]} : vector<16x384xbf16> to vector<16x288xbf16>
    %c112 = arith.constant 112 : index
    %c0_10 = arith.constant 0 : index
    %17 = vector.load %arg7[%c112, %c0_10] : memref<144x288xbf16, #tpu.memory_space<vmem>>, vector<16x288xbf16>
    tpu.vector_store %arg7[%c112, %c0_10], %16 {strides = array<i32>} : memref<144x288xbf16, #tpu.memory_space<vmem>>, vector<16x288xbf16>,
    %18 = vector.extract_strided_slice %1 {offsets = [0, 38], sizes = [16, 288], strides = [1, 1]} : vector<16x384xbf16> to vector<16x288xbf16>
    %c128 = arith.constant 128 : index
    %c0_11 = arith.constant 0 : index
    %19 = vector.load %arg7[%c128, %c0_11] : memref<144x288xbf16, #tpu.memory_space<vmem>>, vector<16x288xbf16>
    tpu.vector_store %arg7[%c128, %c0_11], %18 {strides = array<i32>} : memref<144x288xbf16, #tpu.memory_space<vmem>>, vector<16x288xbf16>,
    %c0_12 = arith.constant 0 : index
    %c0_13 = arith.constant 0 : index
    %20 = vector.load %arg2[%c0_12, %c0_13] : memref<16x144xbf16, #tpu.memory_space<vmem>>, vector<16x144xbf16>
    %c0_14 = arith.constant 0 : index
    %c0_15 = arith.constant 0 : index
    %21 = vector.load %arg7[%c0_14, %c0_15] : memref<144x288xbf16, #tpu.memory_space<vmem>>, vector<144x288xbf16>
    %cst = arith.constant dense<0.000000e+00> : vector<16x288xf32>
    %22 = tpu.matmul %20, %21, %cst {dimension_numbers = #tpu.dot_dimension_numbers<[1], [0], [0], [1], [0, 0, 1, 1], [], []>} : vector<16x144xbf16>, vector<144x288xbf16>, vector<16x288xf32> -> vector<16x288xf32>
    %c0_16 = arith.constant 0 : index
    %c0_17 = arith.constant 0 : index
    %23 = vector.load %arg3[%c0_16, %c0_17] : memref<1x288xf32, #tpu.memory_space<vmem>>, vector<1x288xf32>
    %24 = vector.broadcast %23 : vector<1x288xf32> to vector<16x288xf32>
    %25 = arith.mulf %22, %24 : vector<16x288xf32>
    %cst_18 = arith.constant dense<0.000000e+00> : vector<16xf32>
    %26 = vector.multi_reduction <add>, %25, %cst_18 [1] : vector<16x288xf32> to vector<16xf32>
    %27 = vector.shape_cast %26 : vector<16xf32> to vector<16x1xf32>
    %c0_19 = arith.constant 0 : index
    %c0_20 = arith.constant 0 : index
    %c0_21 = arith.constant 0 : index
    %28 = vector.load %arg5[%c0_19, %c0_20, %c0_21] : memref<1x16x1xf32, #tpu.memory_space<vmem>>, vector<1x16x1xf32>
    %29 = vector.shape_cast %28 : vector<1x16x1xf32> to vector<16x1xf32>
    %30 = vector.shape_cast %27 : vector<16x1xf32> to vector<1x16x1xf32>
    tpu.vector_store %arg5[%c0_19, %c0_20, %c0_21], %30 {strides = array<i32>} : memref<1x16x1xf32, #tpu.memory_space<vmem>>, vector<1x16x1xf32>,
    %31 = arith.mulf %25, %25 : vector<16x288xf32>
    %cst_22 = arith.constant dense<0.000000e+00> : vector<16xf32>
    %32 = vector.multi_reduction <add>, %31, %cst_22 [1] : vector<16x288xf32> to vector<16xf32>
    %33 = vector.shape_cast %32 : vector<16xf32> to vector<16x1xf32>
    %c0_23 = arith.constant 0 : index
    %c0_24 = arith.constant 0 : index
    %c0_25 = arith.constant 0 : index
    %34 = vector.load %arg6[%c0_23, %c0_24, %c0_25] : memref<1x16x1xf32, #tpu.memory_space<vmem>>, vector<1x16x1xf32>
    %35 = vector.shape_cast %34 : vector<1x16x1xf32> to vector<16x1xf32>
    %36 = vector.shape_cast %33 : vector<16x1xf32> to vector<1x16x1xf32>
    tpu.vector_store %arg6[%c0_23, %c0_24, %c0_25], %36 {strides = array<i32>} : memref<1x16x1xf32, #tpu.memory_space<vmem>>, vector<1x16x1xf32>,
    %37 = arith.truncf %25 : vector<16x288xf32> to vector<16x288xbf16>
    %c0_26 = arith.constant 0 : index
    %c0_27 = arith.constant 0 : index
    %c0_28 = arith.constant 0 : index
    %38 = vector.load %arg4[%c0_26, %c0_27, %c0_28] : memref<1x16x288xbf16, #tpu.memory_space<vmem>>, vector<1x16x288xbf16>
    %39 = vector.shape_cast %38 : vector<1x16x288xbf16> to vector<16x288xbf16>
    %40 = vector.shape_cast %37 : vector<16x288xbf16> to vector<1x16x288xbf16>
    tpu.vector_store %arg4[%c0_26, %c0_27, %c0_28], %40 {strides = array<i32>} : memref<1x16x288xbf16, #tpu.memory_space<vmem>>, vector<1x16x288xbf16>,
    return
  }
  func.func @transform_0(%arg0: i32) -> (i32, i32, i32) {
    %c0_i32 = arith.constant 0 : i32
    %c0_i32_0 = arith.constant 0 : i32
    %c0_i32_1 = arith.constant 0 : i32
    return %arg0, %c0_i32, %c0_i32_0 : i32, i32, i32
  }
  func.func @transform_1(%arg0: i32) -> (i32, i32) {
    %c0_i32 = arith.constant 0 : i32
    %c0_i32_0 = arith.constant 0 : i32
    %c0_i32_1 = arith.constant 0 : i32
    return %c0_i32, %c0_i32_0 : i32, i32
  }
  func.func @transform_2(%arg0: i32) -> (i32, i32) {
    %c0_i32 = arith.constant 0 : i32
    %c0_i32_0 = arith.constant 0 : i32
    %c0_i32_1 = arith.constant 0 : i32
    return %c0_i32, %c0_i32_0 : i32, i32
  }
  func.func @transform_3(%arg0: i32) -> (i32, i32, i32) {
    %c0_i32 = arith.constant 0 : i32
    %c0_i32_0 = arith.constant 0 : i32
    %c0_i32_1 = arith.constant 0 : i32
    return %arg0, %c0_i32, %c0_i32_0 : i32, i32, i32
  }
  func.func @transform_4(%arg0: i32) -> (i32, i32, i32) {
    %c0_i32 = arith.constant 0 : i32
    %c0_i32_0 = arith.constant 0 : i32
    %c0_i32_1 = arith.constant 0 : i32
    return %arg0, %c0_i32, %c0_i32_0 : i32, i32, i32
  }
  func.func @transform_5(%arg0: i32) -> (i32, i32, i32) {
    %c0_i32 = arith.constant 0 : i32
    %c0_i32_0 = arith.constant 0 : i32
    %c0_i32_1 = arith.constant 0 : i32
    return %arg0, %c0_i32, %c0_i32_0 : i32, i32, i32
  }
}

module attributes {stable_mosaic.version = 11 : i64} {
  func.func @_bn_conv2_kernel(%arg0: i32, %arg1: memref<1x16x288xbf16, #tpu.memory_space<vmem>>, %arg2: memref<16x144xbf16, #tpu.memory_space<vmem>>, %arg3: memref<1x288xf32, #tpu.memory_space<vmem>>, %arg4: memref<16x1xf32, #tpu.memory_space<vmem>>, %arg5: memref<16x1xf32, #tpu.memory_space<vmem>>, %arg6: memref<1x16x288xf32, #tpu.memory_space<vmem>>, %arg7: memref<144x288xbf16, #tpu.memory_space<vmem>>, %arg8: memref<16x512xbf16, #tpu.memory_space<vmem>>) attributes {dimension_semantics = [#tpu.dimension_semantics<parallel>], iteration_bounds = array<i64: 2>, scalar_prefetch = 0 : i64, scratch_operands = 2 : i64, tpu.core_type = #tpu.core_type<tc>, window_params = [{transform_indices = @transform_0, window_bounds = array<i64: 1, 16, 288>}, {pipeline_mode = #tpu.pipeline_mode<synchronous>, transform_indices = @transform_1, window_bounds = array<i64: 16, 144>}, {pipeline_mode = #tpu.pipeline_mode<synchronous>, transform_indices = @transform_2, window_bounds = array<i64: 1, 288>}, {pipeline_mode = #tpu.pipeline_mode<synchronous>, transform_indices = @transform_3, window_bounds = array<i64: 16, 1>}, {pipeline_mode = #tpu.pipeline_mode<synchronous>, transform_indices = @transform_4, window_bounds = array<i64: 16, 1>}, {transform_indices = @transform_5, window_bounds = array<i64: 1, 16, 288>}]} {
    %cst = arith.constant 0.000000e+00 : bf16
    %0 = vector.broadcast %cst : bf16 to vector<16x128xbf16>
    %c0 = arith.constant 0 : index
    %c0_0 = arith.constant 0 : index
    %1 = vector.load %arg8[%c0, %c0_0] : memref<16x512xbf16, #tpu.memory_space<vmem>>, vector<16x128xbf16>
    tpu.vector_store %arg8[%c0, %c0_0], %0 {strides = array<i32>} : memref<16x512xbf16, #tpu.memory_space<vmem>>, vector<16x128xbf16>,
    %cst_1 = arith.constant 0.000000e+00 : bf16
    %2 = vector.broadcast %cst_1 : bf16 to vector<16x96xbf16>
    %c0_2 = arith.constant 0 : index
    %c416 = arith.constant 416 : index
    %3 = vector.load %arg8[%c0_2, %c416] : memref<16x512xbf16, #tpu.memory_space<vmem>>, vector<16x96xbf16>
    tpu.vector_store %arg8[%c0_2, %c416], %2 {strides = array<i32>} : memref<16x512xbf16, #tpu.memory_space<vmem>>, vector<16x96xbf16>,
    %c0_3 = arith.constant 0 : index
    %c0_4 = arith.constant 0 : index
    %c0_5 = arith.constant 0 : index
    %4 = vector.load %arg1[%c0_3, %c0_4, %c0_5] : memref<1x16x288xbf16, #tpu.memory_space<vmem>>, vector<1x16x288xbf16>
    %5 = vector.shape_cast %4 : vector<1x16x288xbf16> to vector<16x288xbf16>
    %6 = arith.extf %5 : vector<16x288xbf16> to vector<16x288xf32>
    %c0_6 = arith.constant 0 : index
    %c0_7 = arith.constant 0 : index
    %7 = vector.load %arg4[%c0_6, %c0_7] : memref<16x1xf32, #tpu.memory_space<vmem>>, vector<16x1xf32>
    %8 = vector.broadcast %7 : vector<16x1xf32> to vector<16x288xf32>
    %9 = arith.mulf %6, %8 : vector<16x288xf32>
    %c0_8 = arith.constant 0 : index
    %c0_9 = arith.constant 0 : index
    %10 = vector.load %arg5[%c0_8, %c0_9] : memref<16x1xf32, #tpu.memory_space<vmem>>, vector<16x1xf32>
    %11 = vector.broadcast %10 : vector<16x1xf32> to vector<16x288xf32>
    %12 = arith.addf %9, %11 : vector<16x288xf32>
    %cst_10 = arith.constant 0.000000e+00 : f32
    %13 = vector.broadcast %cst_10 : f32 to vector<16x288xf32>
    %14 = arith.maximumf %12, %13 : vector<16x288xf32>
    %c0_11 = arith.constant 0 : index
    %c0_12 = arith.constant 0 : index
    %15 = vector.load %arg3[%c0_11, %c0_12] : memref<1x288xf32, #tpu.memory_space<vmem>>, vector<1x288xf32>
    %16 = vector.broadcast %15 : vector<1x288xf32> to vector<16x288xf32>
    %17 = arith.mulf %14, %16 : vector<16x288xf32>
    %18 = arith.truncf %17 : vector<16x288xf32> to vector<16x288xbf16>
    %c0_13 = arith.constant 0 : index
    %c128 = arith.constant 128 : index
    %19 = vector.load %arg8[%c0_13, %c128] : memref<16x512xbf16, #tpu.memory_space<vmem>>, vector<16x288xbf16>
    tpu.vector_store %arg8[%c0_13, %c128], %18 {strides = array<i32>} : memref<16x512xbf16, #tpu.memory_space<vmem>>, vector<16x288xbf16>,
    %c0_14 = arith.constant 0 : index
    %c0_15 = arith.constant 0 : index
    %20 = vector.load %arg8[%c0_14, %c0_15] : memref<16x512xbf16, #tpu.memory_space<vmem>>, vector<16x512xbf16>
    %21 = vector.extract_strided_slice %20 {offsets = [0, 109], sizes = [16, 288], strides = [1, 1]} : vector<16x512xbf16> to vector<16x288xbf16>
    %c0_16 = arith.constant 0 : index
    %c0_17 = arith.constant 0 : index
    %22 = vector.load %arg7[%c0_16, %c0_17] : memref<144x288xbf16, #tpu.memory_space<vmem>>, vector<16x288xbf16>
    tpu.vector_store %arg7[%c0_16, %c0_17], %21 {strides = array<i32>} : memref<144x288xbf16, #tpu.memory_space<vmem>>, vector<16x288xbf16>,
    %23 = vector.extract_strided_slice %20 {offsets = [0, 110], sizes = [16, 288], strides = [1, 1]} : vector<16x512xbf16> to vector<16x288xbf16>
    %c16 = arith.constant 16 : index
    %c0_18 = arith.constant 0 : index
    %24 = vector.load %arg7[%c16, %c0_18] : memref<144x288xbf16, #tpu.memory_space<vmem>>, vector<16x288xbf16>
    tpu.vector_store %arg7[%c16, %c0_18], %23 {strides = array<i32>} : memref<144x288xbf16, #tpu.memory_space<vmem>>, vector<16x288xbf16>,
    %25 = vector.extract_strided_slice %20 {offsets = [0, 111], sizes = [16, 288], strides = [1, 1]} : vector<16x512xbf16> to vector<16x288xbf16>
    %c32 = arith.constant 32 : index
    %c0_19 = arith.constant 0 : index
    %26 = vector.load %arg7[%c32, %c0_19] : memref<144x288xbf16, #tpu.memory_space<vmem>>, vector<16x288xbf16>
    tpu.vector_store %arg7[%c32, %c0_19], %25 {strides = array<i32>} : memref<144x288xbf16, #tpu.memory_space<vmem>>, vector<16x288xbf16>,
    %27 = vector.extract_strided_slice %20 {offsets = [0, 127], sizes = [16, 288], strides = [1, 1]} : vector<16x512xbf16> to vector<16x288xbf16>
    %c48 = arith.constant 48 : index
    %c0_20 = arith.constant 0 : index
    %28 = vector.load %arg7[%c48, %c0_20] : memref<144x288xbf16, #tpu.memory_space<vmem>>, vector<16x288xbf16>
    tpu.vector_store %arg7[%c48, %c0_20], %27 {strides = array<i32>} : memref<144x288xbf16, #tpu.memory_space<vmem>>, vector<16x288xbf16>,
    %29 = vector.extract_strided_slice %20 {offsets = [0, 128], sizes = [16, 288], strides = [1, 1]} : vector<16x512xbf16> to vector<16x288xbf16>
    %c64 = arith.constant 64 : index
    %c0_21 = arith.constant 0 : index
    %30 = vector.load %arg7[%c64, %c0_21] : memref<144x288xbf16, #tpu.memory_space<vmem>>, vector<16x288xbf16>
    tpu.vector_store %arg7[%c64, %c0_21], %29 {strides = array<i32>} : memref<144x288xbf16, #tpu.memory_space<vmem>>, vector<16x288xbf16>,
    %31 = vector.extract_strided_slice %20 {offsets = [0, 129], sizes = [16, 288], strides = [1, 1]} : vector<16x512xbf16> to vector<16x288xbf16>
    %c80 = arith.constant 80 : index
    %c0_22 = arith.constant 0 : index
    %32 = vector.load %arg7[%c80, %c0_22] : memref<144x288xbf16, #tpu.memory_space<vmem>>, vector<16x288xbf16>
    tpu.vector_store %arg7[%c80, %c0_22], %31 {strides = array<i32>} : memref<144x288xbf16, #tpu.memory_space<vmem>>, vector<16x288xbf16>,
    %33 = vector.extract_strided_slice %20 {offsets = [0, 145], sizes = [16, 288], strides = [1, 1]} : vector<16x512xbf16> to vector<16x288xbf16>
    %c96 = arith.constant 96 : index
    %c0_23 = arith.constant 0 : index
    %34 = vector.load %arg7[%c96, %c0_23] : memref<144x288xbf16, #tpu.memory_space<vmem>>, vector<16x288xbf16>
    tpu.vector_store %arg7[%c96, %c0_23], %33 {strides = array<i32>} : memref<144x288xbf16, #tpu.memory_space<vmem>>, vector<16x288xbf16>,
    %35 = vector.extract_strided_slice %20 {offsets = [0, 146], sizes = [16, 288], strides = [1, 1]} : vector<16x512xbf16> to vector<16x288xbf16>
    %c112 = arith.constant 112 : index
    %c0_24 = arith.constant 0 : index
    %36 = vector.load %arg7[%c112, %c0_24] : memref<144x288xbf16, #tpu.memory_space<vmem>>, vector<16x288xbf16>
    tpu.vector_store %arg7[%c112, %c0_24], %35 {strides = array<i32>} : memref<144x288xbf16, #tpu.memory_space<vmem>>, vector<16x288xbf16>,
    %37 = vector.extract_strided_slice %20 {offsets = [0, 147], sizes = [16, 288], strides = [1, 1]} : vector<16x512xbf16> to vector<16x288xbf16>
    %c128_25 = arith.constant 128 : index
    %c0_26 = arith.constant 0 : index
    %38 = vector.load %arg7[%c128_25, %c0_26] : memref<144x288xbf16, #tpu.memory_space<vmem>>, vector<16x288xbf16>
    tpu.vector_store %arg7[%c128_25, %c0_26], %37 {strides = array<i32>} : memref<144x288xbf16, #tpu.memory_space<vmem>>, vector<16x288xbf16>,
    %c0_27 = arith.constant 0 : index
    %c0_28 = arith.constant 0 : index
    %39 = vector.load %arg2[%c0_27, %c0_28] : memref<16x144xbf16, #tpu.memory_space<vmem>>, vector<16x144xbf16>
    %c0_29 = arith.constant 0 : index
    %c0_30 = arith.constant 0 : index
    %40 = vector.load %arg7[%c0_29, %c0_30] : memref<144x288xbf16, #tpu.memory_space<vmem>>, vector<144x288xbf16>
    %cst_31 = arith.constant dense<0.000000e+00> : vector<16x288xf32>
    %41 = tpu.matmul %39, %40, %cst_31 {dimension_numbers = #tpu.dot_dimension_numbers<[1], [0], [0], [1], [0, 0, 1, 1], [], []>} : vector<16x144xbf16>, vector<144x288xbf16>, vector<16x288xf32> -> vector<16x288xf32>
    %cst_32 = arith.constant 0.000000e+00 : f32
    %42 = vector.broadcast %cst_32 : f32 to vector<16x288xf32>
    %43 = arith.maximumf %41, %42 : vector<16x288xf32>
    %c0_33 = arith.constant 0 : index
    %c0_34 = arith.constant 0 : index
    %c0_35 = arith.constant 0 : index
    %44 = vector.load %arg6[%c0_33, %c0_34, %c0_35] : memref<1x16x288xf32, #tpu.memory_space<vmem>>, vector<1x16x288xf32>
    %45 = vector.shape_cast %44 : vector<1x16x288xf32> to vector<16x288xf32>
    %46 = vector.shape_cast %43 : vector<16x288xf32> to vector<1x16x288xf32>
    tpu.vector_store %arg6[%c0_33, %c0_34, %c0_35], %46 {strides = array<i32>} : memref<1x16x288xf32, #tpu.memory_space<vmem>>, vector<1x16x288xf32>,
    return
  }
  func.func @transform_0(%arg0: i32) -> (i32, i32, i32) {
    %c0_i32 = arith.constant 0 : i32
    %c0_i32_0 = arith.constant 0 : i32
    %c0_i32_1 = arith.constant 0 : i32
    return %arg0, %c0_i32, %c0_i32_0 : i32, i32, i32
  }
  func.func @transform_1(%arg0: i32) -> (i32, i32) {
    %c0_i32 = arith.constant 0 : i32
    %c0_i32_0 = arith.constant 0 : i32
    %c0_i32_1 = arith.constant 0 : i32
    return %c0_i32, %c0_i32_0 : i32, i32
  }
  func.func @transform_2(%arg0: i32) -> (i32, i32) {
    %c0_i32 = arith.constant 0 : i32
    %c0_i32_0 = arith.constant 0 : i32
    %c0_i32_1 = arith.constant 0 : i32
    return %c0_i32, %c0_i32_0 : i32, i32
  }
  func.func @transform_3(%arg0: i32) -> (i32, i32) {
    %c0_i32 = arith.constant 0 : i32
    %c0_i32_0 = arith.constant 0 : i32
    %c0_i32_1 = arith.constant 0 : i32
    return %c0_i32, %c0_i32_0 : i32, i32
  }
  func.func @transform_4(%arg0: i32) -> (i32, i32) {
    %c0_i32 = arith.constant 0 : i32
    %c0_i32_0 = arith.constant 0 : i32
    %c0_i32_1 = arith.constant 0 : i32
    return %c0_i32, %c0_i32_0 : i32, i32
  }
  func.func @transform_5(%arg0: i32) -> (i32, i32, i32) {
    %c0_i32 = arith.constant 0 : i32
    %c0_i32_0 = arith.constant 0 : i32
    %c0_i32_1 = arith.constant 0 : i32
    return %arg0, %c0_i32, %c0_i32_0 : i32, i32, i32
  }
}

</mosaic_0001>

<llo_original>
// kernel: twice_conv_nchw.2
$region0: #{twice_conv_nchw.2}
  #allocation0 [shape = 'u32[]', space=smem, size = 0x4, offset = 0x4, fixed_abs, tag = 'smem constant byte address 0x4 - core index']
  #allocation1 [shape = 'u32[144,128]{1,0:T(1,128)}', space=vmem, size = 0x12000, scoped, tag = 'internal scratch']
  #allocation2 [shape = 'bf16[144,288]{1,0:T(16,128)(2,1)}', space=vmem, size = 0x1b000, scoped, tag = 'scratch operand']
  %s0 = inlined_call_operand.vmem [shape: bf16[2,16,384], index: 0, kind: input, shape index: {}]
  %s1 = inlined_call_operand.vmem [shape: bf16[16,144], index: 1, kind: input, shape index: {}]
  %s2 = inlined_call_operand.vmem [shape: f32[1,288], index: 2, kind: input, shape index: {}]
  %s3 = inlined_call_operand.vmem [shape: bf16[2,16,288], index: 3, kind: output, shape index: {0}]
  %s4 = inlined_call_operand.vmem [shape: f32[2,16,1], index: 4, kind: output, shape index: {1}]
  %s5 = inlined_call_operand.vmem [shape: f32[2,16,1], index: 5, kind: output, shape index: {2}]
  %6 = xla_tuple %s3, %s4, %s5
  %s7 = sld [smem:[#allocation0]]
  $region61: #{twice_conv_nchw.2} parent=0
    _
  %s9 = ssub.s32 1, %s7
  %s10 = scalar_select 0, %s9, %s7
  loop: start=0, step=1, limit=4
  $region2: #{twice_conv_nchw.2} parent=0 // loop_pre_header
    _
  $region3: #{twice_conv_nchw.2} parent=0 // loop_header
    %s12 = sphi 0, %s16
    %p13 = scmp.ge.s32.totalorder %s12, 4
    %s22 = sphi 0, %s24
    %s25 = sphi 0, %s22
    %s26 = sphi 0, %s25
    %s42 = sphi 0, %s26
    %s46 = sphi 0, %s46
    %s48 = sphi 0, %s46
    %s49 = sphi 0, %s48
    %s63 = sphi 0, %s49
    %s67 = sphi 0, %s67
    %s69 = sphi 0, %s67
    %s70 = sphi 0, %s69
    %s84 = sphi 0, %s70
    %s90 = sphi 0, %s92
    %s93 = sphi 0, %s90
    %s94 = sphi 0, %s93
    %s110 = sphi 0, %s94
    %s116 = sphi 0, %s118
    %s119 = sphi 0, %s116
    %s120 = sphi 0, %s119
    %s136 = sphi 0, %s120
    %s142 = sphi 0, %s144
    %s145 = sphi 0, %s142
    %s146 = sphi 0, %s145
    %s162 = sphi 0, %s146
  $region4: #{twice_conv_nchw.2} parent=0 // loop_header_branch
    %15 = sbr.rel (%p13) target = $region8
  $region5: #{twice_conv_nchw.2} parent=0 // loop_body
    %s17 = ssub.s32 %s12, 1
    %s18 = ssub.s32 %s12, 2
    %s19 = sadd.s32 %s12, 1
    %s20 = ssub.s32 %s12, %s19
    %p21 = scmp.eq.s32.totalorder %s20, 0
    %s23 = sadd.s32 %s22, 1
    %s24 = scalar_select %p21, %s22, %s23
    %p27 = pneg %p21
    %p28 = scmp.eq.s32.totalorder %s12, 1
    %p29 = por %p27, %p28
    %p30 = scmp.ne.s32.totalorder %s22, %s25
    %p31 = scmp.eq.s32.totalorder %s12, 0
    %p32 = por %p30, %p31
    %p33 = scmp.ne.s32.totalorder %s22, %s25
    %p34 = scmp.eq.s32.totalorder %s17, 1
    %p35 = por %p33, %p34
    %p36 = scmp.ne.s32.totalorder %s25, %s26
    %p37 = scmp.eq.s32.totalorder %s17, 0
    %p38 = por %p36, %p37
    %p39 = scmp.ne.s32.totalorder %s25, %s26
    %p40 = scmp.eq.s32.totalorder %s18, 1
    %p41 = por %p39, %p40
    %p43 = scmp.ne.s32.totalorder %s26, %s42
    %p44 = scmp.eq.s32.totalorder %s18, 0
    %p45 = por %p43, %p44
    %s47 = sadd.s32 %s46, 1
    %p50 = scmp.eq.s32.totalorder %s12, 1
    %p51 = scmp.ne.s32.totalorder %s46, %s48
    %p52 = scmp.eq.s32.totalorder %s12, 0
    %p53 = por %p51, %p52
    %p54 = scmp.ne.s32.totalorder %s46, %s48
    %p55 = scmp.eq.s32.totalorder %s17, 1
    %p56 = por %p54, %p55
    %p57 = scmp.ne.s32.totalorder %s48, %s49
    %p58 = scmp.eq.s32.totalorder %s17, 0
    %p59 = por %p57, %p58
    %p60 = scmp.ne.s32.totalorder %s48, %s49
    %p61 = scmp.eq.s32.totalorder %s18, 1
    %p62 = por %p60, %p61
    %p64 = scmp.ne.s32.totalorder %s49, %s63
    %p65 = scmp.eq.s32.totalorder %s18, 0
    %p66 = por %p64, %p65
    %s68 = sadd.s32 %s67, 1
    %p71 = scmp.eq.s32.totalorder %s12, 1
    %p72 = scmp.ne.s32.totalorder %s67, %s69
    %p73 = scmp.eq.s32.totalorder %s12, 0
    %p74 = por %p72, %p73
    %p75 = scmp.ne.s32.totalorder %s67, %s69
    %p76 = scmp.eq.s32.totalorder %s17, 1
    %p77 = por %p75, %p76
    %p78 = scmp.ne.s32.totalorder %s69, %s70
    %p79 = scmp.eq.s32.totalorder %s17, 0
    %p80 = por %p78, %p79
    %p81 = scmp.ne.s32.totalorder %s69, %s70
    %p82 = scmp.eq.s32.totalorder %s18, 1
    %p83 = por %p81, %p82
    %p85 = scmp.ne.s32.totalorder %s70, %s84
    %p86 = scmp.eq.s32.totalorder %s18, 0
    %p87 = por %p85, %p86
    %s88 = ssub.s32 %s12, %s19
    %p89 = scmp.eq.s32.totalorder %s88, 0
    %s91 = sadd.s32 %s90, 1
    %s92 = scalar_select %p89, %s90, %s91
    %p95 = pneg %p89
    %p96 = scmp.eq.s32.totalorder %s12, 1
    %p97 = por %p95, %p96
    %p98 = scmp.ne.s32.totalorder %s90, %s93
    %p99 = scmp.eq.s32.totalorder %s12, 0
    %p100 = por %p98, %p99
    %p101 = scmp.ne.s32.totalorder %s90, %s93
    %p102 = scmp.eq.s32.totalorder %s17, 1
    %p103 = por %p101, %p102
    %p104 = scmp.ne.s32.totalorder %s93, %s94
    %p105 = scmp.eq.s32.totalorder %s17, 0
    %p106 = por %p104, %p105
    %p107 = scmp.ne.s32.totalorder %s93, %s94
    %p108 = scmp.eq.s32.totalorder %s18, 1
    %p109 = por %p107, %p108
    %p111 = scmp.ne.s32.totalorder %s94, %s110
    %p112 = scmp.eq.s32.totalorder %s18, 0
    %p113 = por %p111, %p112
    %s114 = ssub.s32 %s12, %s19
    %p115 = scmp.eq.s32.totalorder %s114, 0
    %s117 = sadd.s32 %s116, 1
    %s118 = scalar_select %p115, %s116, %s117
    %p121 = pneg %p115
    %p122 = scmp.eq.s32.totalorder %s12, 1
    %p123 = por %p121, %p122
    %p124 = scmp.ne.s32.totalorder %s116, %s119
    %p125 = scmp.eq.s32.totalorder %s12, 0
    %p126 = por %p124, %p125
    %p127 = scmp.ne.s32.totalorder %s116, %s119
    %p128 = scmp.eq.s32.totalorder %s17, 1
    %p129 = por %p127, %p128
    %p130 = scmp.ne.s32.totalorder %s119, %s120
    %p131 = scmp.eq.s32.totalorder %s17, 0
    %p132 = por %p130, %p131
    %p133 = scmp.ne.s32.totalorder %s119, %s120
    %p134 = scmp.eq.s32.totalorder %s18, 1
    %p135 = por %p133, %p134
    %p137 = scmp.ne.s32.totalorder %s120, %s136
    %p138 = scmp.eq.s32.totalorder %s18, 0
    %p139 = por %p137, %p138
    %s140 = ssub.s32 %s12, %s19
    %p141 = scmp.eq.s32.totalorder %s140, 0
    %s143 = sadd.s32 %s142, 1
    %s144 = scalar_select %p141, %s142, %s143
    %p147 = pneg %p141
    %p148 = scmp.eq.s32.totalorder %s12, 1
    %p149 = por %p147, %p148
    %p150 = scmp.ne.s32.totalorder %s142, %s145
    %p151 = scmp.eq.s32.totalorder %s12, 0
    %p152 = por %p150, %p151
    %p153 = scmp.ne.s32.totalorder %s142, %s145
    %p154 = scmp.eq.s32.totalorder %s17, 1
    %p155 = por %p153, %p154
    %p156 = scmp.ne.s32.totalorder %s145, %s146
    %p157 = scmp.eq.s32.totalorder %s17, 0
    %p158 = por %p156, %p157
    %p159 = scmp.ne.s32.totalorder %s145, %s146
    %p160 = scmp.eq.s32.totalorder %s18, 1
    %p161 = por %p159, %p160
    %p163 = scmp.ne.s32.totalorder %s146, %s162
    %p164 = scmp.eq.s32.totalorder %s18, 0
    %p165 = por %p163, %p164
    %p166 = scmp.le.s32.totalorder 1, %s12
    %p167 = scmp.lt.s32.totalorder %s12, 3
    %p168 = pnand %p166, %p167
    %p169 = pneg %p168
    // Predicated region
    $region9: #{twice_conv_nchw.2} parent=5 // pred_check
      _
    $region10: #{twice_conv_nchw.2} parent=5 // pred_check_branch
      %171 = sbr.rel (%p168) target = $region12
    $region11: #{twice_conv_nchw.2} parent=5 // pred_region
      %s172 = ssub.s32 %s12, 1
      // Predicated region
      $region13: #{twice_conv_nchw.2} parent=11 // pred_check
        %p173 = pneg %p59
      $region14: #{twice_conv_nchw.2} parent=11 // pred_check_branch
        %175 = sbr.rel (%p173) target = $region16
      $region15: #{twice_conv_nchw.2} parent=11 // pred_region
        _
      $region16: #{twice_conv_nchw.2} parent=11 // pred_fallthru
        _
      // Predicated region
      $region17: #{twice_conv_nchw.2} parent=11 // pred_check
        %p176 = pneg %p80
      $region18: #{twice_conv_nchw.2} parent=11 // pred_check_branch
        %178 = sbr.rel (%p176) target = $region20
      $region19: #{twice_conv_nchw.2} parent=11 // pred_region
        _
      $region20: #{twice_conv_nchw.2} parent=11 // pred_fallthru
        _
    $region12: #{twice_conv_nchw.2} parent=5 // pred_fallthru
      _
    %p179 = scmp.lt.s32.totalorder %s12, 2
    // Predicated region
    $region21: #{twice_conv_nchw.2} parent=5 // pred_check
      %p180 = pneg %p179
    $region22: #{twice_conv_nchw.2} parent=5 // pred_check_branch
      %182 = sbr.rel (%p180) target = $region24
    $region23: #{twice_conv_nchw.2} parent=5 // pred_region
      // Predicated region
      $region25: #{twice_conv_nchw.2} parent=23 // pred_check
        %p183 = pneg %p32
      $region26: #{twice_conv_nchw.2} parent=23 // pred_check_branch
        %185 = sbr.rel (%p183) target = $region28
      $region27: #{twice_conv_nchw.2} parent=23 // pred_region
        %p186 = scmp.lt.s32.totalorder %s12, 1
        %s187 = scalar_select %p186, %s12, 1
        %s188 = smul.addr %s187, 6
        %s189 = smul.addr %s188, 4
        %s190 = scalar_lea.vmem %s0, %s189
      $region28: #{twice_conv_nchw.2} parent=23 // pred_fallthru
        _
    $region24: #{twice_conv_nchw.2} parent=5 // pred_fallthru
      _
    %p191 = scmp.le.s32.totalorder 1, %s12
    %p192 = scmp.lt.s32.totalorder %s12, 3
    %p193 = pnand %p191, %p192
    %p194 = pneg %p193
    // Predicated region
    $region29: #{twice_conv_nchw.2} parent=5 // pred_check
      _
    $region30: #{twice_conv_nchw.2} parent=5 // pred_check_branch
      %196 = sbr.rel (%p193) target = $region32
    $region31: #{twice_conv_nchw.2} parent=5 // pred_region
      %s197 = ssub.s32 %s12, 1
      %p198 = scmp.lt.s32.totalorder %s17, 1
      %s199 = scalar_select %p198, %s17, 1
      %s200 = smul.addr %s199, 6
      %s201 = smul.addr %s200, 4
      %s202 = scalar_lea.vmem %s0, %s201
      %p203 = pneg %p38
      %p204 = pneg %p35
      %p205 = pneg %p59
      %p206 = pneg %p56
      %p207 = pneg %p80
      %p208 = pneg %p77
      %p209 = pneg %p106
      %p210 = pneg %p103
      %p211 = scmp.lt.s32.totalorder %s17, 1
      %s212 = scalar_select %p211, %s17, 1
      %s213 = smul.addr %s212, 6
      %s214 = smul.addr %s213, 4
      %s215 = scalar_lea.vmem %s3, %s214
      %p216 = pneg %p132
      %p217 = pneg %p129
      %p218 = scmp.lt.s32.totalorder %s17, 1
      %s219 = scalar_select %p218, %s17, 1
      %s220 = smul.addr %s219, 2
      %s221 = smul.addr %s220, 8
      %s222 = scalar_lea.vmem %s4, %s221
      %p223 = pneg %p158
      %p224 = pneg %p155
      %p225 = scmp.lt.s32.totalorder %s17, 1
      %s226 = scalar_select %p225, %s17, 1
      %s227 = smul.addr %s226, 2
      %s228 = smul.addr %s227, 8
      %s229 = scalar_lea.vmem %s5, %s228
      %p230 = scmp.lt.s32.totalorder %s17, 1
      %s231 = scalar_select %p230, %s17, 1
      %s232 = smul.addr %s231, 6
      %s233 = smul.addr %s232, 4
      %s234 = scalar_lea.vmem %s0, %s233
      %p235 = scmp.lt.s32.totalorder %s17, 1
      %s236 = scalar_select %p235, %s17, 1
      %s237 = smul.addr %s236, 6
      %s238 = smul.addr %s237, 4
      %s239 = scalar_lea.vmem %s3, %s238
      %p240 = scmp.lt.s32.totalorder %s17, 1
      %s241 = scalar_select %p240, %s17, 1
      %s242 = smul.addr %s241, 2
      %s243 = smul.addr %s242, 8
      %s244 = scalar_lea.vmem %s4, %s243
      %p245 = scmp.lt.s32.totalorder %s17, 1
      %s246 = scalar_select %p245, %s17, 1
      %s247 = smul.addr %s246, 2
      %s248 = smul.addr %s247, 8
      %s249 = scalar_lea.vmem %s5, %s248
      %v251 = vld [vmem:[%s234] sm:$0xff]
      %v252 = vld [vmem:[%s234 + $0x8] sm:$0xf]
      %v253 = vld [vmem:[%s234 + $0xc] sm:$0xff]
      %v254 = vld [vmem:[%s234 + $0x14] sm:$0xf]
      %v259 = vunpack.c.l.b16 %v251
      %v260 = vunpack.c.h.b16 %v251
      %v261 = vunpack.c.l.b16 %v252
      %v262 = vunpack.c.l.b16 %v253
      %v263 = vunpack.c.h.b16 %v253
      %v264 = vunpack.c.l.b16 %v254
      %v265 = vpack.c.b16 %v262, %v259
      %v266 = vpack.c.b16 %v263, %v260
      %v267 = vpack.c.b16 %v264, %v261
      %271 = vst [vmem:[#allocation2] sm:$0xff] %v265
      %272 = vst [vmem:[#allocation2 + $0x8] sm:$0xff] %v266
      %vm273 = vcmask 261120
      %274 = vst.msk [vmem:[#allocation2 + $0x10] sm:$0xff] %vm273, %v267
      %275 = vrot.lane.b32.xlu0 %v265, 127
      %v276 = vpop.permute.xlu0 %275
      %277 = vrot.lane.b32.xlu0 %v266, 127
      %v278 = vpop.permute.xlu0 %277
      %279 = vrot.lane.b32.xlu0 %v267, 127
      %v280 = vpop.permute.xlu0 %279
      %vm281 = vcmask 1039360
      %v282 = vsel %vm281, %v276, %v278
      %v283 = vsel %vm281, %v278, %v280
      %287 = vst [vmem:[#allocation2 + $0x18] sm:$0xff] %v282
      %288 = vst [vmem:[#allocation2 + $0x20] sm:$0xff] %v283
      %289 = vst.msk [vmem:[#allocation2 + $0x28] sm:$0xff] %vm273, %v280
      %290 = vrot.lane.b32.xlu0 %v265, 126
      %v291 = vpop.permute.xlu0 %290
      %292 = vrot.lane.b32.xlu0 %v266, 126
      %v293 = vpop.permute.xlu0 %292
      %294 = vrot.lane.b32.xlu0 %v267, 126
      %v295 = vpop.permute.xlu0 %294
      %vm296 = vcmask 1031168
      %v297 = vsel %vm296, %v291, %v293
      %v298 = vsel %vm296, %v293, %v295
      %302 = vst [vmem:[#allocation2 + $0x30] sm:$0xff] %v297
      %303 = vst [vmem:[#allocation2 + $0x38] sm:$0xff] %v298
      %304 = vst.msk [vmem:[#allocation2 + $0x40] sm:$0xff] %vm273, %v295
      %305 = vrot.lane.b32.xlu0 %v265, 110
      %v306 = vpop.permute.xlu0 %305
      %307 = vrot.lane.b32.xlu0 %v266, 110
      %v308 = vpop.permute.xlu0 %307
      %309 = vrot.lane.b32.xlu0 %v267, 110
      %v310 = vpop.permute.xlu0 %309
      %vm311 = vcmask 900096
      %v312 = vsel %vm311, %v306, %v308
      %v313 = vsel %vm311, %v308, %v310
      %317 = vst [vmem:[#allocation2 + $0x48] sm:$0xff] %v312
      %318 = vst [vmem:[#allocation2 + $0x50] sm:$0xff] %v313
      %319 = vst.msk [vmem:[#allocation2 + $0x58] sm:$0xff] %vm273, %v310
      %320 = vrot.lane.b32.xlu0 %v265, 109
      %v321 = vpop.permute.xlu0 %320
      %322 = vrot.lane.b32.xlu0 %v266, 109
      %v323 = vpop.permute.xlu0 %322
      %324 = vrot.lane.b32.xlu0 %v267, 109
      %v325 = vpop.permute.xlu0 %324
      %vm326 = vcmask 891904
      %v327 = vsel %vm326, %v321, %v323
      %v328 = vsel %vm326, %v323, %v325
      %332 = vst [vmem:[#allocation2 + $0x60] sm:$0xff] %v327
      %333 = vst [vmem:[#allocation2 + $0x68] sm:$0xff] %v328
      %334 = vst.msk [vmem:[#allocation2 + $0x70] sm:$0xff] %vm273, %v325
      %335 = vrot.lane.b32.xlu0 %v265, 108
      %v336 = vpop.permute.xlu0 %335
      %337 = vrot.lane.b32.xlu0 %v266, 108
      %v338 = vpop.permute.xlu0 %337
      %339 = vrot.lane.b32.xlu0 %v267, 108
      %v340 = vpop.permute.xlu0 %339
      %vm341 = vcmask 883712
      %v342 = vsel %vm341, %v336, %v338
      %v343 = vsel %vm341, %v338, %v340
      %347 = vst [vmem:[#allocation2 + $0x78] sm:$0xff] %v342
      %348 = vst [vmem:[#allocation2 + $0x80] sm:$0xff] %v343
      %349 = vst.msk [vmem:[#allocation2 + $0x88] sm:$0xff] %vm273, %v340
      %350 = vrot.lane.b32.xlu0 %v265, 92
      %v351 = vpop.permute.xlu0 %350
      %352 = vrot.lane.b32.xlu0 %v266, 92
      %v353 = vpop.permute.xlu0 %352
      %354 = vrot.lane.b32.xlu0 %v267, 92
      %v355 = vpop.permute.xlu0 %354
      %vm356 = vcmask 752640
      %v357 = vsel %vm356, %v351, %v353
      %v358 = vsel %vm356, %v353, %v355
      %362 = vst [vmem:[#allocation2 + $0x90] sm:$0xff] %v357
      %363 = vst [vmem:[#allocation2 + $0x98] sm:$0xff] %v358
      %364 = vst.msk [vmem:[#allocation2 + $0xa0] sm:$0xff] %vm273, %v355
      %365 = vrot.lane.b32.xlu0 %v265, 91
      %v366 = vpop.permute.xlu0 %365
      %367 = vrot.lane.b32.xlu0 %v266, 91
      %v368 = vpop.permute.xlu0 %367
      %369 = vrot.lane.b32.xlu0 %v267, 91
      %v370 = vpop.permute.xlu0 %369
      %vm371 = vcmask 744448
      %v372 = vsel %vm371, %v366, %v368
      %v373 = vsel %vm371, %v368, %v370
      %377 = vst [vmem:[#allocation2 + $0xa8] sm:$0xff] %v372
      %378 = vst [vmem:[#allocation2 + $0xb0] sm:$0xff] %v373
      %379 = vst.msk [vmem:[#allocation2 + $0xb8] sm:$0xff] %vm273, %v370
      %380 = vrot.lane.b32.xlu0 %v265, 90
      %v381 = vpop.permute.xlu0 %380
      %382 = vrot.lane.b32.xlu0 %v266, 90
      %v383 = vpop.permute.xlu0 %382
      %384 = vrot.lane.b32.xlu0 %v267, 90
      %v385 = vpop.permute.xlu0 %384
      %vm386 = vcmask 736256
      %v387 = vsel %vm386, %v381, %v383
      %v388 = vsel %vm386, %v383, %v385
      %392 = vst [vmem:[#allocation2 + $0xc0] sm:$0xff] %v387
      %393 = vst [vmem:[#allocation2 + $0xc8] sm:$0xff] %v388
      %394 = vst.msk [vmem:[#allocation2 + $0xd0] sm:$0xff] %vm273, %v385
      %v395 = vld [vmem:[%s1] sm:$0xff]
      %v396 = vld [vmem:[%s1 + $0x8] sm:$0xff]
      %v397 = vld [vmem:[#allocation2] sm:$0xff]
      %v398 = vld [vmem:[#allocation2 + $0x8] sm:$0xff]
      %v399 = vld [vmem:[#allocation2 + $0x10] sm:$0xff]
      %v400 = vld [vmem:[#allocation2 + $0x18] sm:$0xff]
      %v401 = vld [vmem:[#allocation2 + $0x20] sm:$0xff]
      %v402 = vld [vmem:[#allocation2 + $0x28] sm:$0xff]
      %v403 = vld [vmem:[#allocation2 + $0x30] sm:$0xff]
      %v404 = vld [vmem:[#allocation2 + $0x38] sm:$0xff]
      %v405 = vld [vmem:[#allocation2 + $0x40] sm:$0xff]
      %v406 = vld [vmem:[#allocation2 + $0x48] sm:$0xff]
      %v407 = vld [vmem:[#allocation2 + $0x50] sm:$0xff]
      %v408 = vld [vmem:[#allocation2 + $0x58] sm:$0xff]
      %v409 = vld [vmem:[#allocation2 + $0x60] sm:$0xff]
      %v410 = vld [vmem:[#allocation2 + $0x68] sm:$0xff]
      %v411 = vld [vmem:[#allocation2 + $0x70] sm:$0xff]
      %v412 = vld [vmem:[#allocation2 + $0x78] sm:$0xff]
      %v413 = vld [vmem:[#allocation2 + $0x80] sm:$0xff]
      %v414 = vld [vmem:[#allocation2 + $0x88] sm:$0xff]
      %v415 = vld [vmem:[#allocation2 + $0x90] sm:$0xff]
      %v416 = vld [vmem:[#allocation2 + $0x98] sm:$0xff]
      %v417 = vld [vmem:[#allocation2 + $0xa0] sm:$0xff]
      %v418 = vld [vmem:[#allocation2 + $0xa8] sm:$0xff]
      %v419 = vld [vmem:[#allocation2 + $0xb0] sm:$0xff]
      %v420 = vld [vmem:[#allocation2 + $0xb8] sm:$0xff]
      %v421 = vld [vmem:[#allocation2 + $0xc0] sm:$0xff]
      %v422 = vld [vmem:[#allocation2 + $0xc8] sm:$0xff]
      %v423 = vld [vmem:[#allocation2 + $0xd0] sm:$0xff]
      %v426 = vunpack.c.l.b16 %v395
      %v427 = vunpack.c.h.b16 %v395
      %v428 = vunpack.c.l.b16 %v396
      %v429 = vunpack.c.h.b16 %v396
      %v430 = vpack.c.b16 %v428, %v426
      %v431 = vpack.c.b16 %v429, %v427
      %vm433 = vcmask 130048
      %v435 = vsel %vm433, %v431, 0
      %437 = vmatprep.subr.bf16.mxu0 %v398
      %438 = vmatpush1.bf16.msra.mxu0 %v397
      %439 = vmatprep.subr.bf16.mxu0 %v401
      %440 = vmatpush1.bf16.msra.mxu0 %v400
      %441 = vmatprep.subr.bf16.mxu0 %v404
      %442 = vmatpush1.bf16.msra.mxu0 %v403
      %443 = vmatprep.subr.bf16.mxu0 %v407
      %444 = vmatpush1.bf16.msra.mxu0 %v406
      %445 = vmatprep.subr.bf16.mxu0 %v410
      %446 = vmatpush1.bf16.msra.mxu0 %v409
      %447 = vmatprep.subr.bf16.mxu0 %v413
      %448 = vmatpush1.bf16.msra.mxu0 %v412
      %449 = vmatprep.subr.bf16.mxu0 %v416
      %450 = vmatpush1.bf16.msra.mxu0 %v415
      %451 = vmatprep.subr.bf16.mxu0 %v419
      %452 = vmatpush1.bf16.msra.mxu0 %v418
      %453 = vmatprep.subr.bf16.mxu0 %v422
      %454 = vmatpush1.bf16.msra.mxu0 %v421
      %455 = vmatprep.subr.bf16.mxu0 0
      %456 = vmatpush1.bf16.msra.mxu0 0
      %457 = vmatprep.subr.bf16.mxu0 0
      %458 = vmatpush1.bf16.msra.mxu0 0
      %459 = vmatprep.subr.bf16.mxu0 0
      %460 = vmatpush1.bf16.msra.mxu0 0
      %461 = vmatprep.subr.bf16.mxu0 0
      %462 = vmatpush1.bf16.msra.mxu0 0
      %463 = vmatprep.subr.bf16.mxu0 0
      %464 = vmatpush1.bf16.msra.mxu0 0
      %465 = vmatprep.subr.bf16.mxu0 0
      %466 = vmatpush1.bf16.msra.mxu0 0
      %467 = vmatprep.subr.bf16.mxu0 0
      %468 = vmatpush1.bf16.msra.mxu0 0
      %469 = vmatprep.mubr.bf16.mxu0 %v435
      %470 = vmatmul.mubr.bf16.gmra.mrb[0].mxu0 %v430
      %v471 = vpop.f32.mrb[0].mxu0
      %v472 = vadd.f32 0.0, %v471
      %v473 = vpop.f32.mrb[0].mxu0
      %v474 = vadd.f32 0.0, %v473
      %v475 = vpop.f32.mrb[0].mxu0
      %v476 = vadd.f32 0.0, %v475
      %v477 = vpop.f32.mrb[0].mxu0
      %v478 = vadd.f32 0.0, %v477
      %479 = vdwg.mxu0
      %480 = vmatprep.subr.bf16.mxu0 0
      %481 = vmatpush1.bf16.msra.mxu0 %v399
      %482 = vmatprep.subr.bf16.mxu0 0
      %483 = vmatpush1.bf16.msra.mxu0 %v402
      %484 = vmatprep.subr.bf16.mxu0 0
      %485 = vmatpush1.bf16.msra.mxu0 %v405
      %486 = vmatprep.subr.bf16.mxu0 0
      %487 = vmatpush1.bf16.msra.mxu0 %v408
      %488 = vmatprep.subr.bf16.mxu0 0
      %489 = vmatpush1.bf16.msra.mxu0 %v411
      %490 = vmatprep.subr.bf16.mxu0 0
      %491 = vmatpush1.bf16.msra.mxu0 %v414
      %492 = vmatprep.subr.bf16.mxu0 0
      %493 = vmatpush1.bf16.msra.mxu0 %v417
      %494 = vmatprep.subr.bf16.mxu0 0
      %495 = vmatpush1.bf16.msra.mxu0 %v420
      %496 = vmatprep.subr.bf16.mxu0 0
      %497 = vmatpush1.bf16.msra.mxu0 %v423
      %498 = vmatprep.subr.bf16.mxu0 0
      %499 = vmatpush1.bf16.msra.mxu0 0
      %500 = vmatprep.subr.bf16.mxu0 0
      %501 = vmatpush1.bf16.msra.mxu0 0
      %502 = vmatprep.subr.bf16.mxu0 0
      %503 = vmatpush1.bf16.msra.mxu0 0
      %504 = vmatprep.subr.bf16.mxu0 0
      %505 = vmatpush1.bf16.msra.mxu0 0
      %506 = vmatprep.subr.bf16.mxu0 0
      %507 = vmatpush1.bf16.msra.mxu0 0
      %508 = vmatprep.subr.bf16.mxu0 0
      %509 = vmatpush1.bf16.msra.mxu0 0
      %510 = vmatprep.subr.bf16.mxu0 0
      %511 = vmatpush1.bf16.msra.mxu0 0
      %512 = vmatprep.mubr.bf16.mxu0 %v435
      %513 = vmatmul.mubr.bf16.gmra.mrb[0].mxu0 %v430
      %v514 = vpop.f32.mrb[0].mxu0
      %v515 = vadd.f32 0.0, %v514
      %v516 = vpop.f32.mrb[0].mxu0
      %v517 = vpop.f32.mrb[0].mxu0
      %v518 = vadd.f32 0.0, %v517
      %v519 = vpop.f32.mrb[0].mxu0
      %520 = vdwg.mxu0
      %v521 = vld [vmem:[%s2] sm:$0x7]
      %v523 = vlaneseq
      %v524 = vshrl.u32 %v523, 7
      %v525 = vsub.s32 0, %v524
      %v526 = vrot.slane %v521, %v525
      %v527 = vlaneseq
      %v528 = vshrl.u32 %v527, 7
      %v529 = vsub.s32 1, %v528
      %v530 = vrot.slane %v521, %v529
      %v531 = vlaneseq
      %v532 = vshrl.u32 %v531, 7
      %v533 = vsub.s32 2, %v532
      %v534 = vrot.slane %v521, %v533
      %v538 = vmul.f32 %v472, %v526
      %v539 = vmul.f32 %v474, %v530
      %v540 = vmul.f32 %v515, %v534
      %v541 = vmul.f32 %v476, %v526
      %v542 = vmul.f32 %v478, %v530
      %v543 = vmul.f32 %v518, %v534
      %v544 = vadd.f32 %v538, %v539
      %v545 = vsel %vm273, %v540, 0.0
      %v546 = vadd.f32 %v544, %v545
      %547 = vadd.xlane.f32.xlu0 %v546
      %v548 = vpop.xlane.xlu0 %547
      %v549 = vadd.f32 %v541, %v542
      %v550 = vsel %vm273, %v543, 0.0
      %v551 = vadd.f32 %v549, %v550
      %552 = vadd.xlane.f32.xlu0 %v551
      %v553 = vpop.xlane.xlu0 %552
      %vm554 = vcmask 7168
      %555 = vst.msk [vmem:[%s244] sm:$0xff] %vm554, %v548
      %556 = vst.msk [vmem:[%s244 + $0x8] sm:$0xff] %vm554, %v553
      %v557 = vmul.f32 %v538, %v538
      %v558 = vmul.f32 %v539, %v539
      %v559 = vmul.f32 %v540, %v540
      %v560 = vmul.f32 %v541, %v541
      %v561 = vmul.f32 %v542, %v542
      %v562 = vmul.f32 %v543, %v543
      %v563 = vadd.f32 %v557, %v558
      %v564 = vsel %vm273, %v559, 0.0
      %v565 = vadd.f32 %v563, %v564
      %566 = vadd.xlane.f32.xlu0 %v565
      %v567 = vpop.xlane.xlu0 %566
      %v568 = vadd.f32 %v560, %v561
      %v569 = vsel %vm273, %v562, 0.0
      %v570 = vadd.f32 %v568, %v569
      %571 = vadd.xlane.f32.xlu0 %v570
      %v572 = vpop.xlane.xlu0 %571
      %573 = vst.msk [vmem:[%s249] sm:$0xff] %vm554, %v567
      %574 = vst.msk [vmem:[%s249 + $0x8] sm:$0xff] %vm554, %v572
      %v575 = vpack.c.bf16 %v541, %v538
      %v576 = vpack.c.bf16 %v542, %v539
      %v577 = vpack.c.bf16 %v543, %v540
      %v581 = vunpack.c.l.b16 %v575
      %v582 = vunpack.c.l.b16 %v576
      %v583 = vunpack.c.l.b16 %v577
      %v584 = vunpack.c.h.b16 %v575
      %v585 = vunpack.c.h.b16 %v576
      %v586 = vunpack.c.h.b16 %v577
      %v587 = vpack.c.b16 %v582, %v581
      %v588 = vpack.c.b16 %v583, %v583
      %v589 = vpack.c.b16 %v585, %v584
      %v590 = vpack.c.b16 %v586, %v586
      %595 = vst [vmem:[%s239] sm:$0xff] %v587
      %vm596 = vcmask 257024
      %597 = vst.msk [vmem:[%s239 + $0x8] sm:$0xf] %vm596, %v588
      %598 = vst [vmem:[%s239 + $0xc] sm:$0xff] %v589
      %599 = vst.msk [vmem:[%s239 + $0x14] sm:$0xf] %vm596, %v590
      %p600 = scmp.lt.s32.totalorder %s17, 1
      %s601 = scalar_select %p600, %s17, 1
      %s602 = smul.addr %s601, 6
      %s603 = smul.addr %s602, 4
      %s604 = scalar_lea.vmem %s3, %s603
      %p605 = scmp.lt.s32.totalorder %s17, 1
      %s606 = scalar_select %p605, %s17, 1
      %s607 = smul.addr %s606, 2
      %s608 = smul.addr %s607, 8
      %s609 = scalar_lea.vmem %s4, %s608
      %p610 = scmp.lt.s32.totalorder %s17, 1
      %s611 = scalar_select %p610, %s17, 1
      %s612 = smul.addr %s611, 2
      %s613 = smul.addr %s612, 8
      %s614 = scalar_lea.vmem %s5, %s613
      // Predicated region
      $region33: #{twice_conv_nchw.2} parent=31 // pred_check
        %p615 = pneg %p103
      $region34: #{twice_conv_nchw.2} parent=31 // pred_check_branch
        %617 = sbr.rel (%p615) target = $region36
      $region35: #{twice_conv_nchw.2} parent=31 // pred_region
        _
      $region36: #{twice_conv_nchw.2} parent=31 // pred_fallthru
        _
      // Predicated region
      $region37: #{twice_conv_nchw.2} parent=31 // pred_check
        %p618 = pneg %p129
      $region38: #{twice_conv_nchw.2} parent=31 // pred_check_branch
        %620 = sbr.rel (%p618) target = $region40
      $region39: #{twice_conv_nchw.2} parent=31 // pred_region
        _
      $region40: #{twice_conv_nchw.2} parent=31 // pred_fallthru
        _
      // Predicated region
      $region41: #{twice_conv_nchw.2} parent=31 // pred_check
        %p621 = pneg %p155
      $region42: #{twice_conv_nchw.2} parent=31 // pred_check_branch
        %623 = sbr.rel (%p621) target = $region44
      $region43: #{twice_conv_nchw.2} parent=31 // pred_region
        _
      $region44: #{twice_conv_nchw.2} parent=31 // pred_fallthru
        _
    $region32: #{twice_conv_nchw.2} parent=5 // pred_fallthru
      _
    %p624 = scmp.le.s32.totalorder 2, %s12
    // Predicated region
    $region45: #{twice_conv_nchw.2} parent=5 // pred_check
      %p625 = pneg %p624
    $region46: #{twice_conv_nchw.2} parent=5 // pred_check_branch
      %627 = sbr.rel (%p625) target = $region48
    $region47: #{twice_conv_nchw.2} parent=5 // pred_region
      %s628 = ssub.s32 %s12, 2
      // Predicated region
      $region49: #{twice_conv_nchw.2} parent=47 // pred_check
        %p629 = pneg %p109
      $region50: #{twice_conv_nchw.2} parent=47 // pred_check_branch
        %631 = sbr.rel (%p629) target = $region52
      $region51: #{twice_conv_nchw.2} parent=47 // pred_region
        %p632 = scmp.lt.s32.totalorder %s18, 1
        %s633 = scalar_select %p632, %s18, 1
        %s634 = smul.addr %s633, 6
        %s635 = smul.addr %s634, 4
        %s636 = scalar_lea.vmem %s3, %s635
      $region52: #{twice_conv_nchw.2} parent=47 // pred_fallthru
        _
      // Predicated region
      $region53: #{twice_conv_nchw.2} parent=47 // pred_check
        %p637 = pneg %p135
      $region54: #{twice_conv_nchw.2} parent=47 // pred_check_branch
        %639 = sbr.rel (%p637) target = $region56
      $region55: #{twice_conv_nchw.2} parent=47 // pred_region
        %p640 = scmp.lt.s32.totalorder %s18, 1
        %s641 = scalar_select %p640, %s18, 1
        %s642 = smul.addr %s641, 2
        %s643 = smul.addr %s642, 8
        %s644 = scalar_lea.vmem %s4, %s643
      $region56: #{twice_conv_nchw.2} parent=47 // pred_fallthru
        _
      // Predicated region
      $region57: #{twice_conv_nchw.2} parent=47 // pred_check
        %p645 = pneg %p161
      $region58: #{twice_conv_nchw.2} parent=47 // pred_check_branch
        %647 = sbr.rel (%p645) target = $region60
      $region59: #{twice_conv_nchw.2} parent=47 // pred_region
        %p648 = scmp.lt.s32.totalorder %s18, 1
        %s649 = scalar_select %p648, %s18, 1
        %s650 = smul.addr %s649, 2
        %s651 = smul.addr %s650, 8
        %s652 = scalar_lea.vmem %s5, %s651
      $region60: #{twice_conv_nchw.2} parent=47 // pred_fallthru
        _
    $region48: #{twice_conv_nchw.2} parent=5 // pred_fallthru
      _
  $region6: #{twice_conv_nchw.2} parent=0 // loop_footer
    %s16 = sadd.s32 1, %s12
  $region7: #{twice_conv_nchw.2} parent=0 // loop_footer_branch
    %11 = sbr.rel target = $region3
  $region8: #{twice_conv_nchw.2} parent=0 // loop_exit
    _

// kernel: twice_conv_nchw.3
$region0: #{twice_conv_nchw.3}
  #allocation0 [shape = 'u32[]', space=smem, size = 0x4, offset = 0x4, fixed_abs, tag = 'smem constant byte address 0x4 - core index']
  #allocation1 [shape = 'u32[144,128]{1,0:T(1,128)}', space=vmem, size = 0x12000, scoped, tag = 'internal scratch']
  #allocation2 [shape = 'bf16[144,288]{1,0:T(16,128)(2,1)}', space=vmem, size = 0x1b000, scoped, tag = 'scratch operand']
  #allocation3 [shape = 'bf16[16,512]{1,0:T(16,128)(2,1)}', space=vmem, size = 0x4000, scoped, tag = 'scratch operand']
  %s0 = inlined_call_operand.vmem [shape: bf16[2,16,288], index: 0, kind: input, shape index: {}]
  %s1 = inlined_call_operand.vmem [shape: bf16[16,144], index: 1, kind: input, shape index: {}]
  %s2 = inlined_call_operand.vmem [shape: f32[1,288], index: 2, kind: input, shape index: {}]
  %s3 = inlined_call_operand.vmem [shape: f32[16,1], index: 3, kind: input, shape index: {}]
  %s4 = inlined_call_operand.vmem [shape: f32[16,1], index: 4, kind: input, shape index: {}]
  %s5 = inlined_call_operand.vmem [shape: f32[2,16,288], index: 5, kind: output, shape index: {}]
  %s6 = sld [smem:[#allocation0]]
  $region53: #{twice_conv_nchw.3} parent=0
    _
  %s8 = ssub.s32 1, %s6
  %s9 = scalar_select 0, %s8, %s6
  loop: start=0, step=1, limit=4
  $region2: #{twice_conv_nchw.3} parent=0 // loop_pre_header
    _
  $region3: #{twice_conv_nchw.3} parent=0 // loop_header
    %s11 = sphi 0, %s15
    %p12 = scmp.ge.s32.totalorder %s11, 4
    %s21 = sphi 0, %s23
    %s24 = sphi 0, %s21
    %s25 = sphi 0, %s24
    %s41 = sphi 0, %s25
    %s45 = sphi 0, %s45
    %s47 = sphi 0, %s45
    %s48 = sphi 0, %s47
    %s62 = sphi 0, %s48
    %s66 = sphi 0, %s66
    %s68 = sphi 0, %s66
    %s69 = sphi 0, %s68
    %s83 = sphi 0, %s69
    %s87 = sphi 0, %s87
    %s89 = sphi 0, %s87
    %s90 = sphi 0, %s89
    %s104 = sphi 0, %s90
    %s108 = sphi 0, %s108
    %s110 = sphi 0, %s108
    %s111 = sphi 0, %s110
    %s125 = sphi 0, %s111
    %s131 = sphi 0, %s133
    %s134 = sphi 0, %s131
    %s135 = sphi 0, %s134
    %s151 = sphi 0, %s135
  $region4: #{twice_conv_nchw.3} parent=0 // loop_header_branch
    %14 = sbr.rel (%p12) target = $region8
  $region5: #{twice_conv_nchw.3} parent=0 // loop_body
    %s16 = ssub.s32 %s11, 1
    %s17 = ssub.s32 %s11, 2
    %s18 = sadd.s32 %s11, 1
    %s19 = ssub.s32 %s11, %s18
    %p20 = scmp.eq.s32.totalorder %s19, 0
    %s22 = sadd.s32 %s21, 1
    %s23 = scalar_select %p20, %s21, %s22
    %p26 = pneg %p20
    %p27 = scmp.eq.s32.totalorder %s11, 1
    %p28 = por %p26, %p27
    %p29 = scmp.ne.s32.totalorder %s21, %s24
    %p30 = scmp.eq.s32.totalorder %s11, 0
    %p31 = por %p29, %p30
    %p32 = scmp.ne.s32.totalorder %s21, %s24
    %p33 = scmp.eq.s32.totalorder %s16, 1
    %p34 = por %p32, %p33
    %p35 = scmp.ne.s32.totalorder %s24, %s25
    %p36 = scmp.eq.s32.totalorder %s16, 0
    %p37 = por %p35, %p36
    %p38 = scmp.ne.s32.totalorder %s24, %s25
    %p39 = scmp.eq.s32.totalorder %s17, 1
    %p40 = por %p38, %p39
    %p42 = scmp.ne.s32.totalorder %s25, %s41
    %p43 = scmp.eq.s32.totalorder %s17, 0
    %p44 = por %p42, %p43
    %s46 = sadd.s32 %s45, 1
    %p49 = scmp.eq.s32.totalorder %s11, 1
    %p50 = scmp.ne.s32.totalorder %s45, %s47
    %p51 = scmp.eq.s32.totalorder %s11, 0
    %p52 = por %p50, %p51
    %p53 = scmp.ne.s32.totalorder %s45, %s47
    %p54 = scmp.eq.s32.totalorder %s16, 1
    %p55 = por %p53, %p54
    %p56 = scmp.ne.s32.totalorder %s47, %s48
    %p57 = scmp.eq.s32.totalorder %s16, 0
    %p58 = por %p56, %p57
    %p59 = scmp.ne.s32.totalorder %s47, %s48
    %p60 = scmp.eq.s32.totalorder %s17, 1
    %p61 = por %p59, %p60
    %p63 = scmp.ne.s32.totalorder %s48, %s62
    %p64 = scmp.eq.s32.totalorder %s17, 0
    %p65 = por %p63, %p64
    %s67 = sadd.s32 %s66, 1
    %p70 = scmp.eq.s32.totalorder %s11, 1
    %p71 = scmp.ne.s32.totalorder %s66, %s68
    %p72 = scmp.eq.s32.totalorder %s11, 0
    %p73 = por %p71, %p72
    %p74 = scmp.ne.s32.totalorder %s66, %s68
    %p75 = scmp.eq.s32.totalorder %s16, 1
    %p76 = por %p74, %p75
    %p77 = scmp.ne.s32.totalorder %s68, %s69
    %p78 = scmp.eq.s32.totalorder %s16, 0
    %p79 = por %p77, %p78
    %p80 = scmp.ne.s32.totalorder %s68, %s69
    %p81 = scmp.eq.s32.totalorder %s17, 1
    %p82 = por %p80, %p81
    %p84 = scmp.ne.s32.totalorder %s69, %s83
    %p85 = scmp.eq.s32.totalorder %s17, 0
    %p86 = por %p84, %p85
    %s88 = sadd.s32 %s87, 1
    %p91 = scmp.eq.s32.totalorder %s11, 1
    %p92 = scmp.ne.s32.totalorder %s87, %s89
    %p93 = scmp.eq.s32.totalorder %s11, 0
    %p94 = por %p92, %p93
    %p95 = scmp.ne.s32.totalorder %s87, %s89
    %p96 = scmp.eq.s32.totalorder %s16, 1
    %p97 = por %p95, %p96
    %p98 = scmp.ne.s32.totalorder %s89, %s90
    %p99 = scmp.eq.s32.totalorder %s16, 0
    %p100 = por %p98, %p99
    %p101 = scmp.ne.s32.totalorder %s89, %s90
    %p102 = scmp.eq.s32.totalorder %s17, 1
    %p103 = por %p101, %p102
    %p105 = scmp.ne.s32.totalorder %s90, %s104
    %p106 = scmp.eq.s32.totalorder %s17, 0
    %p107 = por %p105, %p106
    %s109 = sadd.s32 %s108, 1
    %p112 = scmp.eq.s32.totalorder %s11, 1
    %p113 = scmp.ne.s32.totalorder %s108, %s110
    %p114 = scmp.eq.s32.totalorder %s11, 0
    %p115 = por %p113, %p114
    %p116 = scmp.ne.s32.totalorder %s108, %s110
    %p117 = scmp.eq.s32.totalorder %s16, 1
    %p118 = por %p116, %p117
    %p119 = scmp.ne.s32.totalorder %s110, %s111
    %p120 = scmp.eq.s32.totalorder %s16, 0
    %p121 = por %p119, %p120
    %p122 = scmp.ne.s32.totalorder %s110, %s111
    %p123 = scmp.eq.s32.totalorder %s17, 1
    %p124 = por %p122, %p123
    %p126 = scmp.ne.s32.totalorder %s111, %s125
    %p127 = scmp.eq.s32.totalorder %s17, 0
    %p128 = por %p126, %p127
    %s129 = ssub.s32 %s11, %s18
    %p130 = scmp.eq.s32.totalorder %s129, 0
    %s132 = sadd.s32 %s131, 1
    %s133 = scalar_select %p130, %s131, %s132
    %p136 = pneg %p130
    %p137 = scmp.eq.s32.totalorder %s11, 1
    %p138 = por %p136, %p137
    %p139 = scmp.ne.s32.totalorder %s131, %s134
    %p140 = scmp.eq.s32.totalorder %s11, 0
    %p141 = por %p139, %p140
    %p142 = scmp.ne.s32.totalorder %s131, %s134
    %p143 = scmp.eq.s32.totalorder %s16, 1
    %p144 = por %p142, %p143
    %p145 = scmp.ne.s32.totalorder %s134, %s135
    %p146 = scmp.eq.s32.totalorder %s16, 0
    %p147 = por %p145, %p146
    %p148 = scmp.ne.s32.totalorder %s134, %s135
    %p149 = scmp.eq.s32.totalorder %s17, 1
    %p150 = por %p148, %p149
    %p152 = scmp.ne.s32.totalorder %s135, %s151
    %p153 = scmp.eq.s32.totalorder %s17, 0
    %p154 = por %p152, %p153
    %p155 = scmp.le.s32.totalorder 1, %s11
    %p156 = scmp.lt.s32.totalorder %s11, 3
    %p157 = pnand %p155, %p156
    %p158 = pneg %p157
    // Predicated region
    $region9: #{twice_conv_nchw.3} parent=5 // pred_check
      _
    $region10: #{twice_conv_nchw.3} parent=5 // pred_check_branch
      %160 = sbr.rel (%p157) target = $region12
    $region11: #{twice_conv_nchw.3} parent=5 // pred_region
      %s161 = ssub.s32 %s11, 1
      // Predicated region
      $region13: #{twice_conv_nchw.3} parent=11 // pred_check
        %p162 = pneg %p58
      $region14: #{twice_conv_nchw.3} parent=11 // pred_check_branch
        %164 = sbr.rel (%p162) target = $region16
      $region15: #{twice_conv_nchw.3} parent=11 // pred_region
        _
      $region16: #{twice_conv_nchw.3} parent=11 // pred_fallthru
        _
      // Predicated region
      $region17: #{twice_conv_nchw.3} parent=11 // pred_check
        %p165 = pneg %p79
      $region18: #{twice_conv_nchw.3} parent=11 // pred_check_branch
        %167 = sbr.rel (%p165) target = $region20
      $region19: #{twice_conv_nchw.3} parent=11 // pred_region
        _
      $region20: #{twice_conv_nchw.3} parent=11 // pred_fallthru
        _
      // Predicated region
      $region21: #{twice_conv_nchw.3} parent=11 // pred_check
        %p168 = pneg %p100
      $region22: #{twice_conv_nchw.3} parent=11 // pred_check_branch
        %170 = sbr.rel (%p168) target = $region24
      $region23: #{twice_conv_nchw.3} parent=11 // pred_region
        _
      $region24: #{twice_conv_nchw.3} parent=11 // pred_fallthru
        _
      // Predicated region
      $region25: #{twice_conv_nchw.3} parent=11 // pred_check
        %p171 = pneg %p121
      $region26: #{twice_conv_nchw.3} parent=11 // pred_check_branch
        %173 = sbr.rel (%p171) target = $region28
      $region27: #{twice_conv_nchw.3} parent=11 // pred_region
        _
      $region28: #{twice_conv_nchw.3} parent=11 // pred_fallthru
        _
    $region12: #{twice_conv_nchw.3} parent=5 // pred_fallthru
      _
    %p174 = scmp.lt.s32.totalorder %s11, 2
    // Predicated region
    $region29: #{twice_conv_nchw.3} parent=5 // pred_check
      %p175 = pneg %p174
    $region30: #{twice_conv_nchw.3} parent=5 // pred_check_branch
      %177 = sbr.rel (%p175) target = $region32
    $region31: #{twice_conv_nchw.3} parent=5 // pred_region
      // Predicated region
      $region33: #{twice_conv_nchw.3} parent=31 // pred_check
        %p178 = pneg %p31
      $region34: #{twice_conv_nchw.3} parent=31 // pred_check_branch
        %180 = sbr.rel (%p178) target = $region36
      $region35: #{twice_conv_nchw.3} parent=31 // pred_region
        %p181 = scmp.lt.s32.totalorder %s11, 1
        %s182 = scalar_select %p181, %s11, 1
        %s183 = smul.addr %s182, 6
        %s184 = smul.addr %s183, 4
        %s185 = scalar_lea.vmem %s0, %s184
      $region36: #{twice_conv_nchw.3} parent=31 // pred_fallthru
        _
    $region32: #{twice_conv_nchw.3} parent=5 // pred_fallthru
      _
    %p186 = scmp.le.s32.totalorder 1, %s11
    %p187 = scmp.lt.s32.totalorder %s11, 3
    %p188 = pnand %p186, %p187
    %p189 = pneg %p188
    // Predicated region
    $region37: #{twice_conv_nchw.3} parent=5 // pred_check
      _
    $region38: #{twice_conv_nchw.3} parent=5 // pred_check_branch
      %191 = sbr.rel (%p188) target = $region40
    $region39: #{twice_conv_nchw.3} parent=5 // pred_region
      %s192 = ssub.s32 %s11, 1
      %p193 = scmp.lt.s32.totalorder %s16, 1
      %s194 = scalar_select %p193, %s16, 1
      %s195 = smul.addr %s194, 6
      %s196 = smul.addr %s195, 4
      %s197 = scalar_lea.vmem %s0, %s196
      %p198 = pneg %p37
      %p199 = pneg %p34
      %p200 = pneg %p58
      %p201 = pneg %p55
      %p202 = pneg %p79
      %p203 = pneg %p76
      %p204 = pneg %p100
      %p205 = pneg %p97
      %p206 = pneg %p121
      %p207 = pneg %p118
      %p208 = pneg %p147
      %p209 = pneg %p144
      %p210 = scmp.lt.s32.totalorder %s16, 1
      %s211 = scalar_select %p210, %s16, 1
      %s212 = smul.addr %s211, 6
      %s213 = smul.addr %s212, 8
      %s214 = scalar_lea.vmem %s5, %s213
      %p215 = scmp.lt.s32.totalorder %s16, 1
      %s216 = scalar_select %p215, %s16, 1
      %s217 = smul.addr %s216, 6
      %s218 = smul.addr %s217, 4
      %s219 = scalar_lea.vmem %s0, %s218
      %p220 = scmp.lt.s32.totalorder %s16, 1
      %s221 = scalar_select %p220, %s16, 1
      %s222 = smul.addr %s221, 6
      %s223 = smul.addr %s222, 8
      %s224 = scalar_lea.vmem %s5, %s223
      %226 = vst [vmem:[#allocation3] sm:$0xff] 0
      %vm227 = vcmask 1047808
      %228 = vst.msk [vmem:[#allocation3 + $0x18] sm:$0xff] %vm227, 0
      %v229 = vld [vmem:[%s219] sm:$0xff]
      %v230 = vld [vmem:[%s219 + $0x8] sm:$0xf]
      %v231 = vld [vmem:[%s219 + $0xc] sm:$0xff]
      %v232 = vld [vmem:[%s219 + $0x14] sm:$0xf]
      %v233 = vunpack.c.l.bf16 %v229
      %v234 = vunpack.c.h.bf16 %v229
      %v235 = vunpack.c.l.bf16 %v230
      %v236 = vunpack.c.l.bf16 %v231
      %v237 = vunpack.c.h.bf16 %v231
      %v238 = vunpack.c.l.bf16 %v232
      %v239 = vld [vmem:[%s3] sm:$0xff]
      %v240 = vld [vmem:[%s3 + $0x8] sm:$0xff]
      %242 = vset.pattern.permute.xlu0 0
      %243 = vperm.xlu0 %242, %v239
      %v244 = vpop.permute.xlu0 %243
      %247 = vset.pattern.permute.xlu0 0
      %248 = vperm.xlu0 %247, %v240
      %v249 = vpop.permute.xlu0 %248
      %v251 = vmul.f32 %v233, %v244
      %v252 = vmul.f32 %v234, %v244
      %v253 = vmul.f32 %v235, %v244
      %v254 = vmul.f32 %v236, %v249
      %v255 = vmul.f32 %v237, %v249
      %v256 = vmul.f32 %v238, %v249
      %v257 = vld [vmem:[%s4] sm:$0xff]
      %v258 = vld [vmem:[%s4 + $0x8] sm:$0xff]
      %260 = vset.pattern.permute.xlu0 0
      %261 = vperm.xlu0 %260, %v257
      %v262 = vpop.permute.xlu0 %261
      %265 = vset.pattern.permute.xlu0 0
      %266 = vperm.xlu0 %265, %v258
      %v267 = vpop.permute.xlu0 %266
      %v269 = vadd.f32 %v251, %v262
      %v270 = vadd.f32 %v252, %v262
      %v271 = vadd.f32 %v253, %v262
      %v272 = vadd.f32 %v254, %v267
      %v273 = vadd.f32 %v255, %v267
      %v274 = vadd.f32 %v256, %v267
      %v275 = vmax.f32 %v269, 0.0
      %v276 = vmax.f32 %v270, 0.0
      %v277 = vmax.f32 %v271, 0.0
      %v278 = vmax.f32 %v272, 0.0
      %v279 = vmax.f32 %v273, 0.0
      %v280 = vmax.f32 %v274, 0.0
      %v281 = vld [vmem:[%s2] sm:$0x7]
      %v283 = vlaneseq
      %v284 = vshrl.u32 %v283, 7
      %v285 = vsub.s32 0, %v284
      %v286 = vrot.slane %v281, %v285
      %v287 = vlaneseq
      %v288 = vshrl.u32 %v287, 7
      %v289 = vsub.s32 1, %v288
      %v290 = vrot.slane %v281, %v289
      %v291 = vlaneseq
      %v292 = vshrl.u32 %v291, 7
      %v293 = vsub.s32 2, %v292
      %v294 = vrot.slane %v281, %v293
      %v298 = vmul.f32 %v275, %v286
      %v299 = vmul.f32 %v276, %v290
      %v300 = vmul.f32 %v277, %v294
      %v301 = vmul.f32 %v278, %v286
      %v302 = vmul.f32 %v279, %v290
      %v303 = vmul.f32 %v280, %v294
      %v304 = vpack.c.bf16 %v301, %v298
      %v305 = vpack.c.bf16 %v302, %v299
      %v306 = vpack.c.bf16 %v303, %v300
      %307 = vst [vmem:[#allocation3 + $0x8] sm:$0xff] %v304
      %308 = vst [vmem:[#allocation3 + $0x10] sm:$0xff] %v305
      %vm309 = vcmask 261120
      %310 = vst.msk [vmem:[#allocation3 + $0x18] sm:$0xff] %vm309, %v306
      %v311 = vld [vmem:[#allocation3] sm:$0xff]
      %v312 = vld [vmem:[#allocation3 + $0x8] sm:$0xff]
      %v313 = vld [vmem:[#allocation3 + $0x10] sm:$0xff]
      %v314 = vld [vmem:[#allocation3 + $0x18] sm:$0xff]
      %319 = vrot.lane.b32.xlu0 %v311, 19
      %v320 = vpop.permute.xlu0 %319
      %321 = vrot.lane.b32.xlu0 %v312, 19
      %v322 = vpop.permute.xlu0 %321
      %323 = vrot.lane.b32.xlu0 %v313, 19
      %v324 = vpop.permute.xlu0 %323
      %325 = vrot.lane.b32.xlu0 %v314, 19
      %v326 = vpop.permute.xlu0 %325
      %vm327 = vcmask 154624
      %v328 = vsel %vm327, %v320, %v322
      %v329 = vsel %vm327, %v322, %v324
      %v330 = vsel %vm327, %v324, %v326
      %334 = vst [vmem:[#allocation2] sm:$0xff] %v328
      %335 = vst [vmem:[#allocation2 + $0x8] sm:$0xff] %v329
      %336 = vst.msk [vmem:[#allocation2 + $0x10] sm:$0xff] %vm309, %v330
      %337 = vrot.lane.b32.xlu0 %v311, 18
      %v338 = vpop.permute.xlu0 %337
      %339 = vrot.lane.b32.xlu0 %v312, 18
      %v340 = vpop.permute.xlu0 %339
      %341 = vrot.lane.b32.xlu0 %v313, 18
      %v342 = vpop.permute.xlu0 %341
      %343 = vrot.lane.b32.xlu0 %v314, 18
      %v344 = vpop.permute.xlu0 %343
      %vm345 = vcmask 146432
      %v346 = vsel %vm345, %v338, %v340
      %v347 = vsel %vm345, %v340, %v342
      %v348 = vsel %vm345, %v342, %v344
      %352 = vst [vmem:[#allocation2 + $0x18] sm:$0xff] %v346
      %353 = vst [vmem:[#allocation2 + $0x20] sm:$0xff] %v347
      %354 = vst.msk [vmem:[#allocation2 + $0x28] sm:$0xff] %vm309, %v348
      %355 = vrot.lane.b32.xlu0 %v311, 17
      %v356 = vpop.permute.xlu0 %355
      %357 = vrot.lane.b32.xlu0 %v312, 17
      %v358 = vpop.permute.xlu0 %357
      %359 = vrot.lane.b32.xlu0 %v313, 17
      %v360 = vpop.permute.xlu0 %359
      %361 = vrot.lane.b32.xlu0 %v314, 17
      %v362 = vpop.permute.xlu0 %361
      %vm363 = vcmask 138240
      %v364 = vsel %vm363, %v356, %v358
      %v365 = vsel %vm363, %v358, %v360
      %v366 = vsel %vm363, %v360, %v362
      %370 = vst [vmem:[#allocation2 + $0x30] sm:$0xff] %v364
      %371 = vst [vmem:[#allocation2 + $0x38] sm:$0xff] %v365
      %372 = vst.msk [vmem:[#allocation2 + $0x40] sm:$0xff] %vm309, %v366
      %373 = vrot.lane.b32.xlu0 %v311, 1
      %v374 = vpop.permute.xlu0 %373
      %375 = vrot.lane.b32.xlu0 %v312, 1
      %v376 = vpop.permute.xlu0 %375
      %377 = vrot.lane.b32.xlu0 %v313, 1
      %v378 = vpop.permute.xlu0 %377
      %379 = vrot.lane.b32.xlu0 %v314, 1
      %v380 = vpop.permute.xlu0 %379
      %vm381 = vcmask 7168
      %v382 = vsel %vm381, %v374, %v376
      %v383 = vsel %vm381, %v376, %v378
      %v384 = vsel %vm381, %v378, %v380
      %388 = vst [vmem:[#allocation2 + $0x48] sm:$0xff] %v382
      %389 = vst [vmem:[#allocation2 + $0x50] sm:$0xff] %v383
      %390 = vst.msk [vmem:[#allocation2 + $0x58] sm:$0xff] %vm309, %v384
      %391 = vst [vmem:[#allocation2 + $0x60] sm:$0xff] %v312
      %392 = vst [vmem:[#allocation2 + $0x68] sm:$0xff] %v313
      %393 = vst.msk [vmem:[#allocation2 + $0x70] sm:$0xff] %vm309, %v314
      %394 = vrot.lane.b32.xlu0 %v312, 127
      %v395 = vpop.permute.xlu0 %394
      %396 = vrot.lane.b32.xlu0 %v313, 127
      %v397 = vpop.permute.xlu0 %396
      %398 = vrot.lane.b32.xlu0 %v314, 127
      %v399 = vpop.permute.xlu0 %398
      %vm400 = vcmask 1039360
      %v401 = vsel %vm400, %v395, %v397
      %v402 = vsel %vm400, %v397, %v399
      %406 = vst [vmem:[#allocation2 + $0x78] sm:$0xff] %v401
      %407 = vst [vmem:[#allocation2 + $0x80] sm:$0xff] %v402
      %408 = vst.msk [vmem:[#allocation2 + $0x88] sm:$0xff] %vm309, %v399
      %409 = vrot.lane.b32.xlu0 %v312, 111
      %v410 = vpop.permute.xlu0 %409
      %411 = vrot.lane.b32.xlu0 %v313, 111
      %v412 = vpop.permute.xlu0 %411
      %413 = vrot.lane.b32.xlu0 %v314, 111
      %v414 = vpop.permute.xlu0 %413
      %vm415 = vcmask 908288
      %v416 = vsel %vm415, %v410, %v412
      %v417 = vsel %vm415, %v412, %v414
      %421 = vst [vmem:[#allocation2 + $0x90] sm:$0xff] %v416
      %422 = vst [vmem:[#allocation2 + $0x98] sm:$0xff] %v417
      %423 = vst.msk [vmem:[#allocation2 + $0xa0] sm:$0xff] %vm309, %v414
      %424 = vrot.lane.b32.xlu0 %v312, 110
      %v425 = vpop.permute.xlu0 %424
      %426 = vrot.lane.b32.xlu0 %v313, 110
      %v427 = vpop.permute.xlu0 %426
      %428 = vrot.lane.b32.xlu0 %v314, 110
      %v429 = vpop.permute.xlu0 %428
      %vm430 = vcmask 900096
      %v431 = vsel %vm430, %v425, %v427
      %v432 = vsel %vm430, %v427, %v429
      %436 = vst [vmem:[#allocation2 + $0xa8] sm:$0xff] %v431
      %437 = vst [vmem:[#allocation2 + $0xb0] sm:$0xff] %v432
      %438 = vst.msk [vmem:[#allocation2 + $0xb8] sm:$0xff] %vm309, %v429
      %439 = vrot.lane.b32.xlu0 %v312, 109
      %v440 = vpop.permute.xlu0 %439
      %441 = vrot.lane.b32.xlu0 %v313, 109
      %v442 = vpop.permute.xlu0 %441
      %443 = vrot.lane.b32.xlu0 %v314, 109
      %v444 = vpop.permute.xlu0 %443
      %vm445 = vcmask 891904
      %v446 = vsel %vm445, %v440, %v442
      %v447 = vsel %vm445, %v442, %v444
      %451 = vst [vmem:[#allocation2 + $0xc0] sm:$0xff] %v446
      %452 = vst [vmem:[#allocation2 + $0xc8] sm:$0xff] %v447
      %453 = vst.msk [vmem:[#allocation2 + $0xd0] sm:$0xff] %vm309, %v444
      %v454 = vld [vmem:[%s1] sm:$0xff]
      %v455 = vld [vmem:[%s1 + $0x8] sm:$0xff]
      %v456 = vld [vmem:[#allocation2] sm:$0xff]
      %v457 = vld [vmem:[#allocation2 + $0x8] sm:$0xff]
      %v458 = vld [vmem:[#allocation2 + $0x10] sm:$0xff]
      %v459 = vld [vmem:[#allocation2 + $0x18] sm:$0xff]
      %v460 = vld [vmem:[#allocation2 + $0x20] sm:$0xff]
      %v461 = vld [vmem:[#allocation2 + $0x28] sm:$0xff]
      %v462 = vld [vmem:[#allocation2 + $0x30] sm:$0xff]
      %v463 = vld [vmem:[#allocation2 + $0x38] sm:$0xff]
      %v464 = vld [vmem:[#allocation2 + $0x40] sm:$0xff]
      %v465 = vld [vmem:[#allocation2 + $0x48] sm:$0xff]
      %v466 = vld [vmem:[#allocation2 + $0x50] sm:$0xff]
      %v467 = vld [vmem:[#allocation2 + $0x58] sm:$0xff]
      %v468 = vld [vmem:[#allocation2 + $0x60] sm:$0xff]
      %v469 = vld [vmem:[#allocation2 + $0x68] sm:$0xff]
      %v470 = vld [vmem:[#allocation2 + $0x70] sm:$0xff]
      %v471 = vld [vmem:[#allocation2 + $0x78] sm:$0xff]
      %v472 = vld [vmem:[#allocation2 + $0x80] sm:$0xff]
      %v473 = vld [vmem:[#allocation2 + $0x88] sm:$0xff]
      %v474 = vld [vmem:[#allocation2 + $0x90] sm:$0xff]
      %v475 = vld [vmem:[#allocation2 + $0x98] sm:$0xff]
      %v476 = vld [vmem:[#allocation2 + $0xa0] sm:$0xff]
      %v477 = vld [vmem:[#allocation2 + $0xa8] sm:$0xff]
      %v478 = vld [vmem:[#allocation2 + $0xb0] sm:$0xff]
      %v479 = vld [vmem:[#allocation2 + $0xb8] sm:$0xff]
      %v480 = vld [vmem:[#allocation2 + $0xc0] sm:$0xff]
      %v481 = vld [vmem:[#allocation2 + $0xc8] sm:$0xff]
      %v482 = vld [vmem:[#allocation2 + $0xd0] sm:$0xff]
      %v485 = vunpack.c.l.b16 %v454
      %v486 = vunpack.c.h.b16 %v454
      %v487 = vunpack.c.l.b16 %v455
      %v488 = vunpack.c.h.b16 %v455
      %v489 = vpack.c.b16 %v487, %v485
      %v490 = vpack.c.b16 %v488, %v486
      %vm492 = vcmask 130048
      %v494 = vsel %vm492, %v490, 0
      %496 = vmatprep.subr.bf16.mxu0 %v457
      %497 = vmatpush1.bf16.msra.mxu0 %v456
      %498 = vmatprep.subr.bf16.mxu0 %v460
      %499 = vmatpush1.bf16.msra.mxu0 %v459
      %500 = vmatprep.subr.bf16.mxu0 %v463
      %501 = vmatpush1.bf16.msra.mxu0 %v462
      %502 = vmatprep.subr.bf16.mxu0 %v466
      %503 = vmatpush1.bf16.msra.mxu0 %v465
      %504 = vmatprep.subr.bf16.mxu0 %v469
      %505 = vmatpush1.bf16.msra.mxu0 %v468
      %506 = vmatprep.subr.bf16.mxu0 %v472
      %507 = vmatpush1.bf16.msra.mxu0 %v471
      %508 = vmatprep.subr.bf16.mxu0 %v475
      %509 = vmatpush1.bf16.msra.mxu0 %v474
      %510 = vmatprep.subr.bf16.mxu0 %v478
      %511 = vmatpush1.bf16.msra.mxu0 %v477
      %512 = vmatprep.subr.bf16.mxu0 %v481
      %513 = vmatpush1.bf16.msra.mxu0 %v480
      %514 = vmatprep.subr.bf16.mxu0 0
      %515 = vmatpush1.bf16.msra.mxu0 0
      %516 = vmatprep.subr.bf16.mxu0 0
      %517 = vmatpush1.bf16.msra.mxu0 0
      %518 = vmatprep.subr.bf16.mxu0 0
      %519 = vmatpush1.bf16.msra.mxu0 0
      %520 = vmatprep.subr.bf16.mxu0 0
      %521 = vmatpush1.bf16.msra.mxu0 0
      %522 = vmatprep.subr.bf16.mxu0 0
      %523 = vmatpush1.bf16.msra.mxu0 0
      %524 = vmatprep.subr.bf16.mxu0 0
      %525 = vmatpush1.bf16.msra.mxu0 0
      %526 = vmatprep.subr.bf16.mxu0 0
      %527 = vmatpush1.bf16.msra.mxu0 0
      %528 = vmatprep.mubr.bf16.mxu0 %v494
      %529 = vmatmul.mubr.bf16.gmra.mrb[0].mxu0 %v489
      %v530 = vpop.f32.mrb[0].mxu0
      %v531 = vadd.f32 0.0, %v530
      %v532 = vpop.f32.mrb[0].mxu0
      %v533 = vadd.f32 0.0, %v532
      %v534 = vpop.f32.mrb[0].mxu0
      %v535 = vadd.f32 0.0, %v534
      %v536 = vpop.f32.mrb[0].mxu0
      %v537 = vadd.f32 0.0, %v536
      %538 = vdwg.mxu0
      %539 = vmatprep.subr.bf16.mxu0 0
      %540 = vmatpush1.bf16.msra.mxu0 %v458
      %541 = vmatprep.subr.bf16.mxu0 0
      %542 = vmatpush1.bf16.msra.mxu0 %v461
      %543 = vmatprep.subr.bf16.mxu0 0
      %544 = vmatpush1.bf16.msra.mxu0 %v464
      %545 = vmatprep.subr.bf16.mxu0 0
      %546 = vmatpush1.bf16.msra.mxu0 %v467
      %547 = vmatprep.subr.bf16.mxu0 0
      %548 = vmatpush1.bf16.msra.mxu0 %v470
      %549 = vmatprep.subr.bf16.mxu0 0
      %550 = vmatpush1.bf16.msra.mxu0 %v473
      %551 = vmatprep.subr.bf16.mxu0 0
      %552 = vmatpush1.bf16.msra.mxu0 %v476
      %553 = vmatprep.subr.bf16.mxu0 0
      %554 = vmatpush1.bf16.msra.mxu0 %v479
      %555 = vmatprep.subr.bf16.mxu0 0
      %556 = vmatpush1.bf16.msra.mxu0 %v482
      %557 = vmatprep.subr.bf16.mxu0 0
      %558 = vmatpush1.bf16.msra.mxu0 0
      %559 = vmatprep.subr.bf16.mxu0 0
      %560 = vmatpush1.bf16.msra.mxu0 0
      %561 = vmatprep.subr.bf16.mxu0 0
      %562 = vmatpush1.bf16.msra.mxu0 0
      %563 = vmatprep.subr.bf16.mxu0 0
      %564 = vmatpush1.bf16.msra.mxu0 0
      %565 = vmatprep.subr.bf16.mxu0 0
      %566 = vmatpush1.bf16.msra.mxu0 0
      %567 = vmatprep.subr.bf16.mxu0 0
      %568 = vmatpush1.bf16.msra.mxu0 0
      %569 = vmatprep.subr.bf16.mxu0 0
      %570 = vmatpush1.bf16.msra.mxu0 0
      %571 = vmatprep.mubr.bf16.mxu0 %v494
      %572 = vmatmul.mubr.bf16.gmra.mrb[0].mxu0 %v489
      %v573 = vpop.f32.mrb[0].mxu0
      %v574 = vadd.f32 0.0, %v573
      %v575 = vpop.f32.mrb[0].mxu0
      %v576 = vpop.f32.mrb[0].mxu0
      %v577 = vadd.f32 0.0, %v576
      %v578 = vpop.f32.mrb[0].mxu0
      %579 = vdwg.mxu0
      %v580 = vmax.f32 %v531, 0.0
      %v581 = vmax.f32 %v533, 0.0
      %v582 = vmax.f32 %v574, 0.0
      %v583 = vmax.f32 %v535, 0.0
      %v584 = vmax.f32 %v537, 0.0
      %v585 = vmax.f32 %v577, 0.0
      %586 = vst [vmem:[%s224] sm:$0xff] %v580
      %587 = vst [vmem:[%s224 + $0x8] sm:$0xff] %v581
      %588 = vst.msk [vmem:[%s224 + $0x10] sm:$0xff] %vm309, %v582
      %589 = vst [vmem:[%s224 + $0x18] sm:$0xff] %v583
      %590 = vst [vmem:[%s224 + $0x20] sm:$0xff] %v584
      %591 = vst.msk [vmem:[%s224 + $0x28] sm:$0xff] %vm309, %v585
      %p592 = scmp.lt.s32.totalorder %s16, 1
      %s593 = scalar_select %p592, %s16, 1
      %s594 = smul.addr %s593, 6
      %s595 = smul.addr %s594, 8
      %s596 = scalar_lea.vmem %s5, %s595
      // Predicated region
      $region41: #{twice_conv_nchw.3} parent=39 // pred_check
        %p597 = pneg %p144
      $region42: #{twice_conv_nchw.3} parent=39 // pred_check_branch
        %599 = sbr.rel (%p597) target = $region44
      $region43: #{twice_conv_nchw.3} parent=39 // pred_region
        _
      $region44: #{twice_conv_nchw.3} parent=39 // pred_fallthru
        _
    $region40: #{twice_conv_nchw.3} parent=5 // pred_fallthru
      _
    %p600 = scmp.le.s32.totalorder 2, %s11
    // Predicated region
    $region45: #{twice_conv_nchw.3} parent=5 // pred_check
      %p601 = pneg %p600
    $region46: #{twice_conv_nchw.3} parent=5 // pred_check_branch
      %603 = sbr.rel (%p601) target = $region48
    $region47: #{twice_conv_nchw.3} parent=5 // pred_region
      %s604 = ssub.s32 %s11, 2
      // Predicated region
      $region49: #{twice_conv_nchw.3} parent=47 // pred_check
        %p605 = pneg %p150
      $region50: #{twice_conv_nchw.3} parent=47 // pred_check_branch
        %607 = sbr.rel (%p605) target = $region52
      $region51: #{twice_conv_nchw.3} parent=47 // pred_region
        %p608 = scmp.lt.s32.totalorder %s17, 1
        %s609 = scalar_select %p608, %s17, 1
        %s610 = smul.addr %s609, 6
        %s611 = smul.addr %s610, 8
        %s612 = scalar_lea.vmem %s5, %s611
      $region52: #{twice_conv_nchw.3} parent=47 // pred_fallthru
        _
    $region48: #{twice_conv_nchw.3} parent=5 // pred_fallthru
      _
  $region6: #{twice_conv_nchw.3} parent=0 // loop_footer
    %s15 = sadd.s32 1, %s11
  $region7: #{twice_conv_nchw.3} parent=0 // loop_footer_branch
    %10 = sbr.rel target = $region3
  $region8: #{twice_conv_nchw.3} parent=0 // loop_exit
    _

</llo_original>
